<compile_context>
chip_gen: v6e
topology: v6e:2x2x1
jax: 0.10.0
libtpu: 0.0.40
codegen_flags: <defaults>
</compile_context>

<pallas_src>
import functools
import numpy as np
import jax
import jax.numpy as jnp
from jax import lax
from jax.experimental import pallas as pl
from jax.experimental.pallas import tpu as pltpu


def _round_up(x, m):
    return ((x + m - 1) // m) * m


# ------------------------------ fused kernel ---------------------------------

def make_actor_kernel(num_layers, action_dim, log_std_min, log_std_max, out_w):
    log2pi = float(np.log(2.0 * np.pi))
    A = action_dim

    def kernel(*refs):
        it = iter(refs)
        obs_ref = next(it)                                        # (BT, C*H*W) uint8
        conv = [(next(it), next(it)) for _ in range(num_layers)]  # (W bf16, bias f32)
        fcw_ref = next(it)                                        # (flat_pad, feat) bf16
        fcb_ref = next(it)                                        # (1, feat) f32
        g_ref = next(it)                                          # (1, feat) f32
        beta_ref = next(it)                                       # (1, feat) f32
        w1_ref = next(it); b1_ref = next(it)
        w2_ref = next(it); b2_ref = next(it)
        w3_ref = next(it); b3_ref = next(it)
        noise_ref = next(it)                                      # (BT, A) f32
        out_ref = next(it)                                        # (BT, out_w) f32

        bt = obs_ref.shape[0]

        # uint8 -> bf16 (exact for 0..255); the 1/255 scale is folded into the
        # layer-0 conv matrix, so no per-element scaling multiply here.
        x = obs_ref[...].astype(jnp.int32).astype(jnp.float32).astype(jnp.bfloat16)

        # --- conv stack: one dense unrolled-conv matmul per layer -------------
        for w_ref, b_ref in conv:
            y = jnp.dot(x, w_ref[...], preferred_element_type=jnp.float32) + b_ref[...]
            x = jnp.maximum(y, 0.0).astype(jnp.bfloat16)          # (BT, Cout*HWout pad)

        # --- fc + LayerNorm (f32 elementwise) ---------------------------------
        y = jnp.dot(x, fcw_ref[...], preferred_element_type=jnp.float32) + fcb_ref[...]
        mean = jnp.mean(y, axis=-1, keepdims=True)
        var = jnp.mean((y - mean) ** 2, axis=-1, keepdims=True)
        feat = (y - mean) * lax.rsqrt(var + 1e-5) * g_ref[...] + beta_ref[...]

        # --- trunk MLP ---------------------------------------------------------
        h = feat.astype(jnp.bfloat16)
        h1 = jnp.maximum(
            jnp.dot(h, w1_ref[...], preferred_element_type=jnp.float32) + b1_ref[...],
            0.0).astype(jnp.bfloat16)
        h2 = jnp.maximum(
            jnp.dot(h1, w2_ref[...], preferred_element_type=jnp.float32) + b2_ref[...],
            0.0).astype(jnp.bfloat16)
        out = jnp.dot(h2, w3_ref[...], preferred_element_type=jnp.float32) + b3_ref[...]

        mu = out[:, :A]
        log_std = jnp.tanh(out[:, A:])
        log_std = log_std_min + 0.5 * (log_std_max - log_std_min) * (log_std + 1.0)
        std = jnp.exp(log_std)

        noise = noise_ref[...]
        pi = mu + noise * std

        # gaussian_logprob
        log_pi = jnp.sum(-0.5 * noise * noise - log_std, axis=-1, keepdims=True)
        log_pi = log_pi - 0.5 * log2pi * A

        # squash
        mu_t = jnp.tanh(mu)
        pi_t = jnp.tanh(pi)
        log_pi = log_pi - jnp.sum(
            jnp.log(jnp.maximum(1.0 - pi_t * pi_t, 0.0) + 1e-6),
            axis=-1, keepdims=True)

        # pack into one lane-dense slab: [mu | pi | log_pi | log_std | 0-pad]
        pieces = [mu_t, pi_t, log_pi, log_std]
        pad = out_w - (3 * A + 1)
        if pad > 0:
            pieces.append(jnp.zeros((bt, pad), jnp.float32))
        out_ref[...] = jnp.concatenate(pieces, axis=-1)

    return kernel


# --------------------- one-time parameter preparation ------------------------

def _unrolled_conv_matrix(w, H, W, stride):
    """Dense 'unrolled conv' matrix M: (C_in*H*W, C_out*OH*OW), channel-major flat."""
    c_out, c_in, k, _ = w.shape
    OH = (H - k) // stride + 1
    OW = (W - k) // stride + 1
    HWi, HWo = H * W, OH * OW
    M = np.zeros((c_in * HWi, c_out * HWo), np.float32)
    for kh in range(k):
        for kw in range(k):
            wt = w[:, :, kh, kw].T                                # (c_in, c_out)
            for i in range(OH):
                for j in range(OW):
                    p = (kh + stride * i) * W + (kw + stride * j)
                    q = i * OW + j
                    M[p::HWi, q::HWo] += wt
    return M, OH, OW


def prepare_params(params, obs_shape):
    """Pre-compute all kernel-friendly weight layouts ONCE."""
    C, H, W = obs_shape
    conv_w, conv_b = [], []
    h, w = H, W
    in_dim = C * H * W
    in_dim_p = in_dim                       # layer-0 rows must equal obs flat size
    for i, (cw, cb) in enumerate(zip(params['conv_w'], params['conv_b'])):
        stride = 2 if i == 0 else 1
        M, oh, ow = _unrolled_conv_matrix(np.asarray(cw, np.float32), h, w, stride)
        if i == 0:
            M = M * (1.0 / 255.0)           # fold obs/255 into layer-0 weights
        out_dim = M.shape[1]
        out_dim_p = _round_up(out_dim, 128)  # lane-dense intermediates
        Mp = np.zeros((in_dim_p, out_dim_p), np.float32)
        Mp[:in_dim, :out_dim] = M
        bias = np.zeros((1, out_dim_p), np.float32)
        bias[0, :out_dim] = np.repeat(np.asarray(cb, np.float32), oh * ow)
        conv_w.append(jnp.asarray(Mp, jnp.bfloat16))
        conv_b.append(jnp.asarray(bias, jnp.float32))
        h, w = oh, ow
        in_dim, in_dim_p = out_dim, out_dim_p

    feat_dim = params['fc_w'].shape[0]
    # torch flatten order is (C,H,W) = channel-major flat -> plain transpose,
    # zero rows for the padded conv-output columns.
    fcw = np.zeros((in_dim_p, feat_dim), np.float32)
    fcw[:in_dim, :] = np.asarray(params['fc_w'], np.float32).T

    def row(v):
        return jnp.asarray(np.asarray(v, np.float32).reshape(1, -1), jnp.float32)

    return dict(
        conv_w=conv_w, conv_b=conv_b,
        fc_w=jnp.asarray(fcw, jnp.bfloat16),
        fc_b=row(params['fc_b']),
        ln_g=row(params['ln_g']),
        ln_b=row(params['ln_b']),
        w1=jnp.asarray(np.asarray(params['w1'], np.float32).T, jnp.bfloat16),
        b1=row(params['b1']),
        w2=jnp.asarray(np.asarray(params['w2'], np.float32).T, jnp.bfloat16),
        b2=row(params['b2']),
        w3=jnp.asarray(np.asarray(params['w3'], np.float32).T, jnp.bfloat16),
        b3=row(params['b3']),
    )


# ------------------------------ forward wrapper -------------------------------

def actor_forward(prep, obs, noise, log_std_min, log_std_max, b_tile=None):
    """Actor.forward(obs, compute_pi=True, compute_log_pi=True) — one pallas_call."""
    B, C, H, W = obs.shape
    CHW = C * H * W
    A = noise.shape[-1]
    num_layers = len(prep['conv_w'])
    out_w = _round_up(3 * A + 1, 128)       # lane-dense packed output width

    if b_tile is None:
        # Whole batch in one step for small B; 256-row tiles (MXU-filling on
        # v6e/v7x, >=2 parallel steps for v7x's two TCs) for large B.
        b_tile = B if B <= 256 else 256
    Bp = _round_up(B, b_tile)

    obs_f = obs.reshape(B, CHW)             # metadata-only reshape (contiguous)
    if Bp != B:
        obs_f = jnp.pad(obs_f, ((0, Bp - B), (0, 0)))
        noise = jnp.pad(noise, ((0, Bp - B), (0, 0)))

    def full_spec(a):
        n = a.ndim
        return pl.BlockSpec(a.shape, lambda b, n=n: (0,) * n)   # VMEM-resident weights

    args = [obs_f]
    in_specs = [pl.BlockSpec((b_tile, CHW), lambda b: (b, 0))]
    for l in range(num_layers):
        for a in (prep['conv_w'][l], prep['conv_b'][l]):
            args.append(a)
            in_specs.append(full_spec(a))
    for name in ('fc_w', 'fc_b', 'ln_g', 'ln_b', 'w1', 'b1', 'w2', 'b2', 'w3', 'b3'):
        a = prep[name]
        args.append(a)
        in_specs.append(full_spec(a))
    args.append(noise)
    in_specs.append(pl.BlockSpec((b_tile, A), lambda b: (b, 0)))

    kernel = make_actor_kernel(num_layers, A, log_std_min, log_std_max, out_w)
    packed = pl.pallas_call(
        kernel,
        grid=(Bp // b_tile,),
        out_shape=jax.ShapeDtypeStruct((Bp, out_w), jnp.float32),
        in_specs=in_specs,
        out_specs=pl.BlockSpec((b_tile, out_w), lambda b: (b, 0)),
        compiler_params=pltpu.CompilerParams(
            dimension_semantics=("parallel",),
            vmem_limit_bytes=32 * 1024 * 1024),
    )(*args)

    mu = packed[:B, 0:A]
    pi = packed[:B, A:2 * A]
    log_pi = packed[:B, 2 * A:2 * A + 1]
    log_std = packed[:B, 2 * A + 1:3 * A + 1]
    return mu, pi, log_pi, log_std


# ------------------------- parameter initialization --------------------------

def _orthogonal(key, rows, cols, gain=1.0):
    a = jax.random.normal(key, (rows, cols), dtype=jnp.float32)
    flip = rows < cols
    if flip:
        a = a.T
    q, r = jnp.linalg.qr(a)
    q = q * jnp.sign(jnp.diagonal(r))[None, :]
    if flip:
        q = q.T
    return (gain * q).astype(jnp.float32)


def _conv_delta_orthogonal(key, c_out, c_in, k=3):
    """weight_init for Conv2d: zeros except orthogonal (relu gain) center tap."""
    w = jnp.zeros((c_out, c_in, k, k), jnp.float32)
    center = _orthogonal(key, c_out, c_in, gain=float(np.sqrt(2.0)))
    return w.at[:, :, k // 2, k // 2].set(center)


def init_params(key, obs_shape, action_dim, hidden_dim, feature_dim,
                num_layers, num_filters):
    C, H, W = obs_shape
    keys = jax.random.split(key, num_layers + 4)
    conv_w, conv_b = [], []
    in_c, oh, ow = C, H, W
    for i in range(num_layers):
        stride = 2 if i == 0 else 1
        conv_w.append(_conv_delta_orthogonal(keys[i], num_filters, in_c, 3))
        conv_b.append(jnp.zeros((num_filters,), jnp.float32))
        oh = (oh - 3) // stride + 1
        ow = (ow - 3) // stride + 1
        in_c = num_filters
    flat_dim = num_filters * oh * ow
    return dict(
        conv_w=conv_w, conv_b=conv_b,
        fc_w=_orthogonal(keys[num_layers + 0], feature_dim, flat_dim),
        fc_b=jnp.zeros((feature_dim,), jnp.float32),
        ln_g=jnp.ones((feature_dim,), jnp.float32),
        ln_b=jnp.zeros((feature_dim,), jnp.float32),
        w1=_orthogonal(keys[num_layers + 1], hidden_dim, feature_dim),
        b1=jnp.zeros((hidden_dim,), jnp.float32),
        w2=_orthogonal(keys[num_layers + 2], hidden_dim, hidden_dim),
        b2=jnp.zeros((hidden_dim,), jnp.float32),
        w3=_orthogonal(keys[num_layers + 3], 2 * action_dim, hidden_dim),
        b3=jnp.zeros((2 * action_dim,), jnp.float32),
    )


# ------------------------------ JAX reference --------------------------------

def reference_forward(params, obs, noise, log_std_min, log_std_max):
    x = obs.astype(jnp.float32) / 255.0
    for i, (w, b) in enumerate(zip(params['conv_w'], params['conv_b'])):
        s = 2 if i == 0 else 1
        x = lax.conv_general_dilated(x, w, (s, s), 'VALID',
                                     dimension_numbers=('NCHW', 'OIHW', 'NCHW'))
        x = jax.nn.relu(x + b[None, :, None, None])
    h = x.reshape(x.shape[0], -1)
    y = h @ params['fc_w'].T + params['fc_b']
    mean = y.mean(-1, keepdims=True)
    var = ((y - mean) ** 2).mean(-1, keepdims=True)
    feat = (y - mean) / jnp.sqrt(var + 1e-5) * params['ln_g'] + params['ln_b']
    h1 = jax.nn.relu(feat @ params['w1'].T + params['b1'])
    h2 = jax.nn.relu(h1 @ params['w2'].T + params['b2'])
    out = h2 @ params['w3'].T + params['b3']
    A = params['w3'].shape[0] // 2
    mu, log_std = out[:, :A], out[:, A:]
    log_std = jnp.tanh(log_std)
    log_std = log_std_min + 0.5 * (log_std_max - log_std_min) * (log_std + 1.0)
    std = jnp.exp(log_std)
    pi = mu + noise * std
    log_pi = jnp.sum(-0.5 * noise ** 2 - log_std, -1, keepdims=True) \
        - 0.5 * np.log(2.0 * np.pi) * A
    mu_t, pi_t = jnp.tanh(mu), jnp.tanh(pi)
    log_pi = log_pi - jnp.sum(jnp.log(jax.nn.relu(1.0 - pi_t ** 2) + 1e-6),
                              -1, keepdims=True)
    return mu_t, pi_t, log_pi, log_std


# ----------------------------------- main -------------------------------------

if __name__ == "__main__":
    # Small, consistent shapes: obs_shape=(4,16,16), action_shape=(3,)
    obs_shape = (4, 16, 16)
    action_dim = 3
    hidden_dim = 32
    encoder_feature_dim = 32
    num_layers = 2
    num_filters = 8
    log_std_min, log_std_max = -10.0, 2.0
    B = 2

    key = jax.random.PRNGKey(0)
    k_param, k_obs, k_noise = jax.random.split(key, 3)
    params = init_params(k_param, obs_shape, action_dim, hidden_dim,
                         encoder_feature_dim, num_layers, num_filters)
    prep = prepare_params(params, obs_shape)      # one-time weight re-layout

    # uint8 pixel observations (as produced by the replay buffer / env).
    obs = jax.random.randint(k_obs, (B,) + obs_shape, 0, 256,
                             dtype=jnp.int32).astype(jnp.uint8)
    # torch.randn_like(mu) equivalent, sampled outside the kernel and passed in.
    noise = jax.random.normal(k_noise, (B, action_dim), jnp.float32)

    fwd = jax.jit(functools.partial(actor_forward,
                                    log_std_min=log_std_min,
                                    log_std_max=log_std_max))
    outs = fwd(prep, obs, noise)
    outs = jax.block_until_ready(outs)

    refs = reference_forward(params, obs, noise, log_std_min, log_std_max)
    # bf16 matmul operands (f32 accumulation) vs f32 reference -> relaxed tolerance.
    for o, r in zip(outs, refs):
        np.testing.assert_allclose(np.asarray(o), np.asarray(r), rtol=2e-2, atol=3e-2)

    print("KERNEL_OK")
</pallas_src>

<mosaic_0001>
module attributes {stable_mosaic.version = 11 : i64} {
  func.func @kernel(%arg0: i32, %arg1: memref<2x1024xi8, #tpu.memory_space<vmem>>, %arg2: memref<1024x512xbf16, #tpu.memory_space<vmem>>, %arg3: memref<1x512xf32, #tpu.memory_space<vmem>>, %arg4: memref<512x256xbf16, #tpu.memory_space<vmem>>, %arg5: memref<1x256xf32, #tpu.memory_space<vmem>>, %arg6: memref<256x32xbf16, #tpu.memory_space<vmem>>, %arg7: memref<1x32xf32, #tpu.memory_space<vmem>>, %arg8: memref<1x32xf32, #tpu.memory_space<vmem>>, %arg9: memref<1x32xf32, #tpu.memory_space<vmem>>, %arg10: memref<32x32xbf16, #tpu.memory_space<vmem>>, %arg11: memref<1x32xf32, #tpu.memory_space<vmem>>, %arg12: memref<32x32xbf16, #tpu.memory_space<vmem>>, %arg13: memref<1x32xf32, #tpu.memory_space<vmem>>, %arg14: memref<32x6xbf16, #tpu.memory_space<vmem>>, %arg15: memref<1x6xf32, #tpu.memory_space<vmem>>, %arg16: memref<2x3xf32, #tpu.memory_space<vmem>>, %arg17: memref<2x128xf32, #tpu.memory_space<vmem>>) attributes {dimension_semantics = [#tpu.dimension_semantics<parallel>], iteration_bounds = array<i64: 1>, scalar_prefetch = 0 : i64, scratch_operands = 0 : i64, tpu.core_type = #tpu.core_type<tc>, window_params = [{transform_indices = @transform_0, window_bounds = array<i64: 2, 1024>}, {pipeline_mode = #tpu.pipeline_mode<synchronous>, transform_indices = @transform_1, window_bounds = array<i64: 1024, 512>}, {pipeline_mode = #tpu.pipeline_mode<synchronous>, transform_indices = @transform_2, window_bounds = array<i64: 1, 512>}, {pipeline_mode = #tpu.pipeline_mode<synchronous>, transform_indices = @transform_3, window_bounds = array<i64: 512, 256>}, {pipeline_mode = #tpu.pipeline_mode<synchronous>, transform_indices = @transform_4, window_bounds = array<i64: 1, 256>}, {pipeline_mode = #tpu.pipeline_mode<synchronous>, transform_indices = @transform_5, window_bounds = array<i64: 256, 32>}, {pipeline_mode = #tpu.pipeline_mode<synchronous>, transform_indices = @transform_6, window_bounds = array<i64: 1, 32>}, {pipeline_mode = #tpu.pipeline_mode<synchronous>, transform_indices = @transform_7, window_bounds = array<i64: 1, 32>}, {pipeline_mode = #tpu.pipeline_mode<synchronous>, transform_indices = @transform_8, window_bounds = array<i64: 1, 32>}, {pipeline_mode = #tpu.pipeline_mode<synchronous>, transform_indices = @transform_9, window_bounds = array<i64: 32, 32>}, {pipeline_mode = #tpu.pipeline_mode<synchronous>, transform_indices = @transform_10, window_bounds = array<i64: 1, 32>}, {pipeline_mode = #tpu.pipeline_mode<synchronous>, transform_indices = @transform_11, window_bounds = array<i64: 32, 32>}, {pipeline_mode = #tpu.pipeline_mode<synchronous>, transform_indices = @transform_12, window_bounds = array<i64: 1, 32>}, {pipeline_mode = #tpu.pipeline_mode<synchronous>, transform_indices = @transform_13, window_bounds = array<i64: 32, 6>}, {pipeline_mode = #tpu.pipeline_mode<synchronous>, transform_indices = @transform_14, window_bounds = array<i64: 1, 6>}, {transform_indices = @transform_15, window_bounds = array<i64: 2, 3>}, {transform_indices = @transform_16, window_bounds = array<i64: 2, 128>}]} {
    %c0 = arith.constant 0 : index
    %c0_0 = arith.constant 0 : index
    %0 = vector.load %arg1[%c0, %c0_0] : memref<2x1024xi8, #tpu.memory_space<vmem>>, vector<2x1024xi8>
    %1 = arith.extui %0 : vector<2x1024xi8> to vector<2x1024xi32>
    %2 = arith.sitofp %1 : vector<2x1024xi32> to vector<2x1024xf32>
    %3 = arith.truncf %2 : vector<2x1024xf32> to vector<2x1024xbf16>
    %c0_1 = arith.constant 0 : index
    %c0_2 = arith.constant 0 : index
    %4 = vector.load %arg2[%c0_1, %c0_2] : memref<1024x512xbf16, #tpu.memory_space<vmem>>, vector<1024x512xbf16>
    %cst = arith.constant dense<0.000000e+00> : vector<2x512xf32>
    %5 = tpu.matmul %3, %4, %cst {dimension_numbers = #tpu.dot_dimension_numbers<[1], [0], [0], [1], [0, 0, 1, 1], [], []>} : vector<2x1024xbf16>, vector<1024x512xbf16>, vector<2x512xf32> -> vector<2x512xf32>
    %c0_3 = arith.constant 0 : index
    %c0_4 = arith.constant 0 : index
    %6 = vector.load %arg3[%c0_3, %c0_4] : memref<1x512xf32, #tpu.memory_space<vmem>>, vector<1x512xf32>
    %7 = vector.broadcast %6 : vector<1x512xf32> to vector<2x512xf32>
    %8 = arith.addf %5, %7 : vector<2x512xf32>
    %cst_5 = arith.constant 0.000000e+00 : f32
    %9 = vector.broadcast %cst_5 : f32 to vector<2x512xf32>
    %10 = arith.maximumf %8, %9 : vector<2x512xf32>
    %11 = arith.truncf %10 : vector<2x512xf32> to vector<2x512xbf16>
    %c0_6 = arith.constant 0 : index
    %c0_7 = arith.constant 0 : index
    %12 = vector.load %arg4[%c0_6, %c0_7] : memref<512x256xbf16, #tpu.memory_space<vmem>>, vector<512x256xbf16>
    %cst_8 = arith.constant dense<0.000000e+00> : vector<2x256xf32>
    %13 = tpu.matmul %11, %12, %cst_8 {dimension_numbers = #tpu.dot_dimension_numbers<[1], [0], [0], [1], [0, 0, 1, 1], [], []>} : vector<2x512xbf16>, vector<512x256xbf16>, vector<2x256xf32> -> vector<2x256xf32>
    %c0_9 = arith.constant 0 : index
    %c0_10 = arith.constant 0 : index
    %14 = vector.load %arg5[%c0_9, %c0_10] : memref<1x256xf32, #tpu.memory_space<vmem>>, vector<1x256xf32>
    %15 = vector.broadcast %14 : vector<1x256xf32> to vector<2x256xf32>
    %16 = arith.addf %13, %15 : vector<2x256xf32>
    %cst_11 = arith.constant 0.000000e+00 : f32
    %17 = vector.broadcast %cst_11 : f32 to vector<2x256xf32>
    %18 = arith.maximumf %16, %17 : vector<2x256xf32>
    %19 = arith.truncf %18 : vector<2x256xf32> to vector<2x256xbf16>
    %c0_12 = arith.constant 0 : index
    %c0_13 = arith.constant 0 : index
    %20 = vector.load %arg6[%c0_12, %c0_13] : memref<256x32xbf16, #tpu.memory_space<vmem>>, vector<256x32xbf16>
    %cst_14 = arith.constant dense<0.000000e+00> : vector<2x32xf32>
    %21 = tpu.matmul %19, %20, %cst_14 {dimension_numbers = #tpu.dot_dimension_numbers<[1], [0], [0], [1], [0, 0, 1, 1], [], []>} : vector<2x256xbf16>, vector<256x32xbf16>, vector<2x32xf32> -> vector<2x32xf32>
    %c0_15 = arith.constant 0 : index
    %c0_16 = arith.constant 0 : index
    %22 = vector.load %arg7[%c0_15, %c0_16] : memref<1x32xf32, #tpu.memory_space<vmem>>, vector<1x32xf32>
    %23 = vector.broadcast %22 : vector<1x32xf32> to vector<2x32xf32>
    %24 = arith.addf %21, %23 : vector<2x32xf32>
    %cst_17 = arith.constant dense<0.000000e+00> : vector<2xf32>
    %25 = vector.multi_reduction <add>, %24, %cst_17 [1] : vector<2x32xf32> to vector<2xf32>
    %26 = vector.shape_cast %25 : vector<2xf32> to vector<2x1xf32>
    %cst_18 = arith.constant 3.200000e+01 : f32
    %27 = vector.broadcast %cst_18 : f32 to vector<2x1xf32>
    %28 = arith.divf %26, %27 : vector<2x1xf32>
    %29 = vector.broadcast %28 : vector<2x1xf32> to vector<2x32xf32>
    %30 = arith.subf %24, %29 : vector<2x32xf32>
    %31 = arith.mulf %30, %30 : vector<2x32xf32>
    %cst_19 = arith.constant dense<0.000000e+00> : vector<2xf32>
    %32 = vector.multi_reduction <add>, %31, %cst_19 [1] : vector<2x32xf32> to vector<2xf32>
    %33 = vector.shape_cast %32 : vector<2xf32> to vector<2x1xf32>
    %cst_20 = arith.constant 3.200000e+01 : f32
    %34 = vector.broadcast %cst_20 : f32 to vector<2x1xf32>
    %35 = arith.divf %33, %34 : vector<2x1xf32>
    %36 = vector.broadcast %28 : vector<2x1xf32> to vector<2x32xf32>
    %37 = arith.subf %24, %36 : vector<2x32xf32>
    %cst_21 = arith.constant 9.99999974E-6 : f32
    %38 = vector.broadcast %cst_21 : f32 to vector<2x1xf32>
    %39 = arith.addf %35, %38 : vector<2x1xf32>
    %40 = math.rsqrt %39 : vector<2x1xf32>
    %41 = vector.broadcast %40 : vector<2x1xf32> to vector<2x32xf32>
    %42 = arith.mulf %37, %41 : vector<2x32xf32>
    %c0_22 = arith.constant 0 : index
    %c0_23 = arith.constant 0 : index
    %43 = vector.load %arg8[%c0_22, %c0_23] : memref<1x32xf32, #tpu.memory_space<vmem>>, vector<1x32xf32>
    %44 = vector.broadcast %43 : vector<1x32xf32> to vector<2x32xf32>
    %45 = arith.mulf %42, %44 : vector<2x32xf32>
    %c0_24 = arith.constant 0 : index
    %c0_25 = arith.constant 0 : index
    %46 = vector.load %arg9[%c0_24, %c0_25] : memref<1x32xf32, #tpu.memory_space<vmem>>, vector<1x32xf32>
    %47 = vector.broadcast %46 : vector<1x32xf32> to vector<2x32xf32>
    %48 = arith.addf %45, %47 : vector<2x32xf32>
    %49 = arith.truncf %48 : vector<2x32xf32> to vector<2x32xbf16>
    %c0_26 = arith.constant 0 : index
    %c0_27 = arith.constant 0 : index
    %50 = vector.load %arg10[%c0_26, %c0_27] : memref<32x32xbf16, #tpu.memory_space<vmem>>, vector<32x32xbf16>
    %cst_28 = arith.constant dense<0.000000e+00> : vector<2x32xf32>
    %51 = tpu.matmul %49, %50, %cst_28 {dimension_numbers = #tpu.dot_dimension_numbers<[1], [0], [0], [1], [0, 0, 1, 1], [], []>} : vector<2x32xbf16>, vector<32x32xbf16>, vector<2x32xf32> -> vector<2x32xf32>
    %c0_29 = arith.constant 0 : index
    %c0_30 = arith.constant 0 : index
    %52 = vector.load %arg11[%c0_29, %c0_30] : memref<1x32xf32, #tpu.memory_space<vmem>>, vector<1x32xf32>
    %53 = vector.broadcast %52 : vector<1x32xf32> to vector<2x32xf32>
    %54 = arith.addf %51, %53 : vector<2x32xf32>
    %cst_31 = arith.constant 0.000000e+00 : f32
    %55 = vector.broadcast %cst_31 : f32 to vector<2x32xf32>
    %56 = arith.maximumf %54, %55 : vector<2x32xf32>
    %57 = arith.truncf %56 : vector<2x32xf32> to vector<2x32xbf16>
    %c0_32 = arith.constant 0 : index
    %c0_33 = arith.constant 0 : index
    %58 = vector.load %arg12[%c0_32, %c0_33] : memref<32x32xbf16, #tpu.memory_space<vmem>>, vector<32x32xbf16>
    %cst_34 = arith.constant dense<0.000000e+00> : vector<2x32xf32>
    %59 = tpu.matmul %57, %58, %cst_34 {dimension_numbers = #tpu.dot_dimension_numbers<[1], [0], [0], [1], [0, 0, 1, 1], [], []>} : vector<2x32xbf16>, vector<32x32xbf16>, vector<2x32xf32> -> vector<2x32xf32>
    %c0_35 = arith.constant 0 : index
    %c0_36 = arith.constant 0 : index
    %60 = vector.load %arg13[%c0_35, %c0_36] : memref<1x32xf32, #tpu.memory_space<vmem>>, vector<1x32xf32>
    %61 = vector.broadcast %60 : vector<1x32xf32> to vector<2x32xf32>
    %62 = arith.addf %59, %61 : vector<2x32xf32>
    %cst_37 = arith.constant 0.000000e+00 : f32
    %63 = vector.broadcast %cst_37 : f32 to vector<2x32xf32>
    %64 = arith.maximumf %62, %63 : vector<2x32xf32>
    %65 = arith.truncf %64 : vector<2x32xf32> to vector<2x32xbf16>
    %c0_38 = arith.constant 0 : index
    %c0_39 = arith.constant 0 : index
    %66 = vector.load %arg14[%c0_38, %c0_39] : memref<32x6xbf16, #tpu.memory_space<vmem>>, vector<32x6xbf16>
    %cst_40 = arith.constant dense<0.000000e+00> : vector<2x6xf32>
    %67 = tpu.matmul %65, %66, %cst_40 {dimension_numbers = #tpu.dot_dimension_numbers<[1], [0], [0], [1], [0, 0, 1, 1], [], []>} : vector<2x32xbf16>, vector<32x6xbf16>, vector<2x6xf32> -> vector<2x6xf32>
    %c0_41 = arith.constant 0 : index
    %c0_42 = arith.constant 0 : index
    %68 = vector.load %arg15[%c0_41, %c0_42] : memref<1x6xf32, #tpu.memory_space<vmem>>, vector<1x6xf32>
    %69 = vector.broadcast %68 : vector<1x6xf32> to vector<2x6xf32>
    %70 = arith.addf %67, %69 : vector<2x6xf32>
    %71 = vector.extract_strided_slice %70 {offsets = [0, 0], sizes = [2, 3], strides = [1, 1]} : vector<2x6xf32> to vector<2x3xf32>
    %72 = vector.extract_strided_slice %70 {offsets = [0, 3], sizes = [2, 3], strides = [1, 1]} : vector<2x6xf32> to vector<2x3xf32>
    %73 = math.tanh %72 : vector<2x3xf32>
    %cst_43 = arith.constant 1.000000e+00 : f32
    %74 = vector.broadcast %cst_43 : f32 to vector<2x3xf32>
    %75 = arith.addf %73, %74 : vector<2x3xf32>
    %cst_44 = arith.constant 6.000000e+00 : f32
    %76 = vector.broadcast %cst_44 : f32 to vector<2x3xf32>
    %77 = arith.mulf %76, %75 : vector<2x3xf32>
    %cst_45 = arith.constant -1.000000e+01 : f32
    %78 = vector.broadcast %cst_45 : f32 to vector<2x3xf32>
    %79 = arith.addf %78, %77 : vector<2x3xf32>
    %80 = math.exp %79 : vector<2x3xf32>
    %c0_46 = arith.constant 0 : index
    %c0_47 = arith.constant 0 : index
    %81 = vector.load %arg16[%c0_46, %c0_47] : memref<2x3xf32, #tpu.memory_space<vmem>>, vector<2x3xf32>
    %82 = arith.mulf %81, %80 : vector<2x3xf32>
    %83 = arith.addf %71, %82 : vector<2x3xf32>
    %cst_48 = arith.constant -5.000000e-01 : f32
    %84 = vector.broadcast %cst_48 : f32 to vector<2x3xf32>
    %85 = arith.mulf %84, %81 : vector<2x3xf32>
    %86 = arith.mulf %85, %81 : vector<2x3xf32>
    %87 = arith.subf %86, %79 : vector<2x3xf32>
    %cst_49 = arith.constant dense<0.000000e+00> : vector<2xf32>
    %88 = vector.multi_reduction <add>, %87, %cst_49 [1] : vector<2x3xf32> to vector<2xf32>
    %89 = vector.shape_cast %88 : vector<2xf32> to vector<2x1xf32>
    %cst_50 = arith.constant 2.75681567 : f32
    %90 = vector.broadcast %cst_50 : f32 to vector<2x1xf32>
    %91 = arith.subf %89, %90 : vector<2x1xf32>
    %92 = math.tanh %71 : vector<2x3xf32>
    %93 = math.tanh %83 : vector<2x3xf32>
    %94 = arith.mulf %93, %93 : vector<2x3xf32>
    %cst_51 = arith.constant 1.000000e+00 : f32
    %95 = vector.broadcast %cst_51 : f32 to vector<2x3xf32>
    %96 = arith.subf %95, %94 : vector<2x3xf32>
    %cst_52 = arith.constant 0.000000e+00 : f32
    %97 = vector.broadcast %cst_52 : f32 to vector<2x3xf32>
    %98 = arith.maximumf %96, %97 : vector<2x3xf32>
    %cst_53 = arith.constant 9.99999997E-7 : f32
    %99 = vector.broadcast %cst_53 : f32 to vector<2x3xf32>
    %100 = arith.addf %98, %99 : vector<2x3xf32>
    %101 = math.log %100 : vector<2x3xf32>
    %cst_54 = arith.constant dense<0.000000e+00> : vector<2xf32>
    %102 = vector.multi_reduction <add>, %101, %cst_54 [1] : vector<2x3xf32> to vector<2xf32>
    %103 = vector.shape_cast %102 : vector<2xf32> to vector<2x1xf32>
    %104 = arith.subf %91, %103 : vector<2x1xf32>
    %cst_55 = arith.constant 0.000000e+00 : f32
    %105 = vector.broadcast %cst_55 : f32 to vector<2x118xf32>
    %106 = tpu.concatenate %92, %93, %104, %79, %105 in 1 : vector<2x3xf32>, vector<2x3xf32>, vector<2x1xf32>, vector<2x3xf32>, vector<2x118xf32> -> vector<2x128xf32>
    %c0_56 = arith.constant 0 : index
    %c0_57 = arith.constant 0 : index
    %107 = vector.load %arg17[%c0_56, %c0_57] : memref<2x128xf32, #tpu.memory_space<vmem>>, vector<2x128xf32>
    tpu.vector_store %arg17[%c0_56, %c0_57], %106 {strides = array<i32>} : memref<2x128xf32, #tpu.memory_space<vmem>>, vector<2x128xf32>,
    return
  }
  func.func @transform_0(%arg0: i32) -> (i32, i32) {
    %c0_i32 = arith.constant 0 : i32
    %c0_i32_0 = arith.constant 0 : i32
    return %arg0, %c0_i32 : i32, i32
  }
  func.func @transform_1(%arg0: i32) -> (i32, i32) {
    %c0_i32 = arith.constant 0 : i32
    %c0_i32_0 = arith.constant 0 : i32
    %c0_i32_1 = arith.constant 0 : i32
    return %c0_i32, %c0_i32_0 : i32, i32
  }
  func.func @transform_2(%arg0: i32) -> (i32, i32) {
    %c0_i32 = arith.constant 0 : i32
    %c0_i32_0 = arith.constant 0 : i32
    %c0_i32_1 = arith.constant 0 : i32
    return %c0_i32, %c0_i32_0 : i32, i32
  }
  func.func @transform_3(%arg0: i32) -> (i32, i32) {
    %c0_i32 = arith.constant 0 : i32
    %c0_i32_0 = arith.constant 0 : i32
    %c0_i32_1 = arith.constant 0 : i32
    return %c0_i32, %c0_i32_0 : i32, i32
  }
  func.func @transform_4(%arg0: i32) -> (i32, i32) {
    %c0_i32 = arith.constant 0 : i32
    %c0_i32_0 = arith.constant 0 : i32
    %c0_i32_1 = arith.constant 0 : i32
    return %c0_i32, %c0_i32_0 : i32, i32
  }
  func.func @transform_5(%arg0: i32) -> (i32, i32) {
    %c0_i32 = arith.constant 0 : i32
    %c0_i32_0 = arith.constant 0 : i32
    %c0_i32_1 = arith.constant 0 : i32
    return %c0_i32, %c0_i32_0 : i32, i32
  }
  func.func @transform_6(%arg0: i32) -> (i32, i32) {
    %c0_i32 = arith.constant 0 : i32
    %c0_i32_0 = arith.constant 0 : i32
    %c0_i32_1 = arith.constant 0 : i32
    return %c0_i32, %c0_i32_0 : i32, i32
  }
  func.func @transform_7(%arg0: i32) -> (i32, i32) {
    %c0_i32 = arith.constant 0 : i32
    %c0_i32_0 = arith.constant 0 : i32
    %c0_i32_1 = arith.constant 0 : i32
    return %c0_i32, %c0_i32_0 : i32, i32
  }
  func.func @transform_8(%arg0: i32) -> (i32, i32) {
    %c0_i32 = arith.constant 0 : i32
    %c0_i32_0 = arith.constant 0 : i32
    %c0_i32_1 = arith.constant 0 : i32
    return %c0_i32, %c0_i32_0 : i32, i32
  }
  func.func @transform_9(%arg0: i32) -> (i32, i32) {
    %c0_i32 = arith.constant 0 : i32
    %c0_i32_0 = arith.constant 0 : i32
    %c0_i32_1 = arith.constant 0 : i32
    return %c0_i32, %c0_i32_0 : i32, i32
  }
  func.func @transform_10(%arg0: i32) -> (i32, i32) {
    %c0_i32 = arith.constant 0 : i32
    %c0_i32_0 = arith.constant 0 : i32
    %c0_i32_1 = arith.constant 0 : i32
    return %c0_i32, %c0_i32_0 : i32, i32
  }
  func.func @transform_11(%arg0: i32) -> (i32, i32) {
    %c0_i32 = arith.constant 0 : i32
    %c0_i32_0 = arith.constant 0 : i32
    %c0_i32_1 = arith.constant 0 : i32
    return %c0_i32, %c0_i32_0 : i32, i32
  }
  func.func @transform_12(%arg0: i32) -> (i32, i32) {
    %c0_i32 = arith.constant 0 : i32
    %c0_i32_0 = arith.constant 0 : i32
    %c0_i32_1 = arith.constant 0 : i32
    return %c0_i32, %c0_i32_0 : i32, i32
  }
  func.func @transform_13(%arg0: i32) -> (i32, i32) {
    %c0_i32 = arith.constant 0 : i32
    %c0_i32_0 = arith.constant 0 : i32
    %c0_i32_1 = arith.constant 0 : i32
    return %c0_i32, %c0_i32_0 : i32, i32
  }
  func.func @transform_14(%arg0: i32) -> (i32, i32) {
    %c0_i32 = arith.constant 0 : i32
    %c0_i32_0 = arith.constant 0 : i32
    %c0_i32_1 = arith.constant 0 : i32
    return %c0_i32, %c0_i32_0 : i32, i32
  }
  func.func @transform_15(%arg0: i32) -> (i32, i32) {
    %c0_i32 = arith.constant 0 : i32
    %c0_i32_0 = arith.constant 0 : i32
    return %arg0, %c0_i32 : i32, i32
  }
  func.func @transform_16(%arg0: i32) -> (i32, i32) {
    %c0_i32 = arith.constant 0 : i32
    %c0_i32_0 = arith.constant 0 : i32
    return %arg0, %c0_i32 : i32, i32
  }
}

</mosaic_0001>

<llo_original>
// kernel: actor_forward.1
$region0: #{actor_forward.1}
  #allocation0 [shape = 'u32[]', space=smem, size = 0x4, offset = 0x4, fixed_abs, tag = 'smem constant byte address 0x4 - core index']
  #allocation1 [shape = 'u32[144,128]{1,0:T(1,128)}', space=vmem, size = 0x12000, scoped, tag = 'internal scratch']
  %s0 = inlined_call_operand.vmem [shape: u8[2,1024], index: 0, kind: input, shape index: {}]
  %s1 = inlined_call_operand.hbm [shape: bf16[1024,512], index: 1, kind: input, shape index: {}]
  %s2 = inlined_call_operand.vmem [shape: f32[1,512], index: 2, kind: input, shape index: {}]
  %s3 = inlined_call_operand.hbm [shape: bf16[512,256], index: 3, kind: input, shape index: {}]
  %s4 = inlined_call_operand.vmem [shape: f32[1,256], index: 4, kind: input, shape index: {}]
  %s5 = inlined_call_operand.vmem [shape: bf16[256,32], index: 5, kind: input, shape index: {}]
  %s6 = inlined_call_operand.vmem [shape: f32[1,32], index: 6, kind: input, shape index: {}]
  %s7 = inlined_call_operand.vmem [shape: f32[1,32], index: 7, kind: input, shape index: {}]
  %s8 = inlined_call_operand.vmem [shape: f32[1,32], index: 8, kind: input, shape index: {}]
  %s9 = inlined_call_operand.vmem [shape: bf16[32,32], index: 9, kind: input, shape index: {}]
  %s10 = inlined_call_operand.vmem [shape: f32[1,32], index: 10, kind: input, shape index: {}]
  %s11 = inlined_call_operand.vmem [shape: bf16[32,32], index: 11, kind: input, shape index: {}]
  %s12 = inlined_call_operand.vmem [shape: f32[1,32], index: 12, kind: input, shape index: {}]
  %s13 = inlined_call_operand.vmem [shape: bf16[32,6], index: 13, kind: input, shape index: {}]
  %s14 = inlined_call_operand.vmem [shape: f32[1,6], index: 14, kind: input, shape index: {}]
  %s15 = inlined_call_operand.vmem [shape: f32[2,3], index: 15, kind: input, shape index: {}]
  %s16 = inlined_call_operand.vmem [shape: f32[2,128], index: 16, kind: output, shape index: {}]
  %s17 = sld [smem:[#allocation0]]
  $region82: #{actor_forward.1} parent=0
    _
  %s19 = ssub.s32 1, %s17
  %s20 = scalar_select 0, %s19, %s17
  $region1: #{actor_forward.1} parent=0
    #allocation2 [shape = 'u8[1048576]{0}', space=vmem, size = 0x100000, scoped, tag = 'input window, operand 1, single buffered']
    #allocation3 [shape = 's32[1]{0}', space=sflag, size = 0x4, scoped, tag = 'scoped memory for actor_forward.1']
    #allocation4 [shape = 'u8[262144]{0}', space=vmem, size = 0x40000, scoped, tag = 'input window, operand 3, single buffered']
    #allocation5 [shape = 's32[1]{0}', space=sflag, size = 0x4, scoped, tag = 'scoped memory for actor_forward.1']
    %21 = vsyncpa [#allocation3], 0
    %22 = vsyncpa [#allocation5], 0
    // Predicated region
    $region2: #{actor_forward.1} parent=1 // pred_check
      _
    $region3: #{actor_forward.1} parent=1 // pred_check_branch
      %24 = sbr.rel (0) target = $region5
    $region4: #{actor_forward.1} parent=1 // pred_region
      _
    $region5: #{actor_forward.1} parent=1 // pred_fallthru
      _
    // Predicated region
    $region6: #{actor_forward.1} parent=1 // pred_check
      _
    $region7: #{actor_forward.1} parent=1 // pred_check_branch
      %26 = sbr.rel (0) target = $region9
    $region8: #{actor_forward.1} parent=1 // pred_region
      %s28 = ssub.s32 32768, 32768
      %29 = vsyncadd [#allocation3], %s28
      %s30 = sshll.u32 [#allocation2], 4
      %s31 = int_to_ptr.vmem [resolvable:$true] %s30
      %36 = dma.hbm_to_vmem [thread:$0]  %s1, 32768, %s31, [#allocation3], 256, 256, 16
    $region9: #{actor_forward.1} parent=1 // pred_fallthru
      _
    // Predicated region
    $region10: #{actor_forward.1} parent=1 // pred_check
      _
    $region11: #{actor_forward.1} parent=1 // pred_check_branch
      %38 = sbr.rel (0) target = $region13
    $region12: #{actor_forward.1} parent=1 // pred_region
      _
    $region13: #{actor_forward.1} parent=1 // pred_fallthru
      _
    // Predicated region
    $region14: #{actor_forward.1} parent=1 // pred_check
      _
    $region15: #{actor_forward.1} parent=1 // pred_check_branch
      %40 = sbr.rel (0) target = $region17
    $region16: #{actor_forward.1} parent=1 // pred_region
      %s42 = ssub.s32 8192, 8192
      %43 = vsyncadd [#allocation5], %s42
      %s44 = sshll.u32 [#allocation4], 4
      %s45 = int_to_ptr.vmem [resolvable:$true] %s44
      %50 = dma.hbm_to_vmem [thread:$0]  %s3, 8192, %s45, [#allocation5], 128, 128, 8
    $region17: #{actor_forward.1} parent=1 // pred_fallthru
      _
    // Predicated region
    $region18: #{actor_forward.1} parent=1 // pred_check
      _
    $region19: #{actor_forward.1} parent=1 // pred_check_branch
      %52 = sbr.rel (0) target = $region21
    $region20: #{actor_forward.1} parent=1 // pred_region
      _
    $region21: #{actor_forward.1} parent=1 // pred_fallthru
      _
    // Predicated region
    $region22: #{actor_forward.1} parent=1 // pred_check
      _
    $region23: #{actor_forward.1} parent=1 // pred_check_branch
      %54 = sbr.rel (0) target = $region25
    $region24: #{actor_forward.1} parent=1 // pred_region
      _
    $region25: #{actor_forward.1} parent=1 // pred_fallthru
      _
    // Predicated region
    $region26: #{actor_forward.1} parent=1 // pred_check
      _
    $region27: #{actor_forward.1} parent=1 // pred_check_branch
      %56 = sbr.rel (0) target = $region29
    $region28: #{actor_forward.1} parent=1 // pred_region
      _
    $region29: #{actor_forward.1} parent=1 // pred_fallthru
      _
    // Predicated region
    $region30: #{actor_forward.1} parent=1 // pred_check
      _
    $region31: #{actor_forward.1} parent=1 // pred_check_branch
      %58 = sbr.rel (0) target = $region33
    $region32: #{actor_forward.1} parent=1 // pred_region
      _
    $region33: #{actor_forward.1} parent=1 // pred_fallthru
      _
    // Predicated region
    $region34: #{actor_forward.1} parent=1 // pred_check
      _
    $region35: #{actor_forward.1} parent=1 // pred_check_branch
      %60 = sbr.rel (0) target = $region37
    $region36: #{actor_forward.1} parent=1 // pred_region
      _
    $region37: #{actor_forward.1} parent=1 // pred_fallthru
      _
    // Predicated region
    $region38: #{actor_forward.1} parent=1 // pred_check
      _
    $region39: #{actor_forward.1} parent=1 // pred_check_branch
      %62 = sbr.rel (0) target = $region41
    $region40: #{actor_forward.1} parent=1 // pred_region
      _
    $region41: #{actor_forward.1} parent=1 // pred_fallthru
      _
    // Predicated region
    $region42: #{actor_forward.1} parent=1 // pred_check
      _
    $region43: #{actor_forward.1} parent=1 // pred_check_branch
      %64 = sbr.rel (0) target = $region45
    $region44: #{actor_forward.1} parent=1 // pred_region
      _
    $region45: #{actor_forward.1} parent=1 // pred_fallthru
      _
    // Predicated region
    $region46: #{actor_forward.1} parent=1 // pred_check
      _
    $region47: #{actor_forward.1} parent=1 // pred_check_branch
      %66 = sbr.rel (0) target = $region49
    $region48: #{actor_forward.1} parent=1 // pred_region
      _
    $region49: #{actor_forward.1} parent=1 // pred_fallthru
      _
    // Predicated region
    $region50: #{actor_forward.1} parent=1 // pred_check
      _
    $region51: #{actor_forward.1} parent=1 // pred_check_branch
      %68 = sbr.rel (0) target = $region53
    $region52: #{actor_forward.1} parent=1 // pred_region
      _
    $region53: #{actor_forward.1} parent=1 // pred_fallthru
      _
    // Predicated region
    $region54: #{actor_forward.1} parent=1 // pred_check
      _
    $region55: #{actor_forward.1} parent=1 // pred_check_branch
      %70 = sbr.rel (0) target = $region57
    $region56: #{actor_forward.1} parent=1 // pred_region
      _
    $region57: #{actor_forward.1} parent=1 // pred_fallthru
      _
    // Predicated region
    $region58: #{actor_forward.1} parent=1 // pred_check
      _
    $region59: #{actor_forward.1} parent=1 // pred_check_branch
      %72 = sbr.rel (0) target = $region61
    $region60: #{actor_forward.1} parent=1 // pred_region
      _
    $region61: #{actor_forward.1} parent=1 // pred_fallthru
      _
    // Predicated region
    $region62: #{actor_forward.1} parent=1 // pred_check
      _
    $region63: #{actor_forward.1} parent=1 // pred_check_branch
      %74 = sbr.rel (0) target = $region65
    $region64: #{actor_forward.1} parent=1 // pred_region
      _
    $region65: #{actor_forward.1} parent=1 // pred_fallthru
      _
    // Predicated region
    $region66: #{actor_forward.1} parent=1 // pred_check
      _
    $region67: #{actor_forward.1} parent=1 // pred_check_branch
      %76 = sbr.rel (0) target = $region69
    $region68: #{actor_forward.1} parent=1 // pred_region
      %77 = dma.done [#allocation3], 32768
    $region69: #{actor_forward.1} parent=1 // pred_fallthru
      _
    // Predicated region
    $region70: #{actor_forward.1} parent=1 // pred_check
      _
    $region71: #{actor_forward.1} parent=1 // pred_check_branch
      %79 = sbr.rel (0) target = $region73
    $region72: #{actor_forward.1} parent=1 // pred_region
      %80 = dma.done [#allocation5], 8192
    $region73: #{actor_forward.1} parent=1 // pred_fallthru
      _
    %v82 = vld [vmem:[%s0] sm:$0xff]
    %v83 = vcombine.high %v82, %v82
    %v85 = vunpack.c.l.s4 1935823168
    %v86 = vunpack.c.0.s8 %v85
    %v87 = vlaneseq
    %v88 = vshrl.u32 %v87, 7
    %v89 = vsub.s32 %v86, %v88
    %v90 = vrot.slane %v82, %v89
    %v92 = vunpack.c.l.s4 1935823168
    %v93 = vunpack.c.0.s8 %v92
    %v94 = vlaneseq
    %v95 = vshrl.u32 %v94, 7
    %v96 = vsub.s32 %v93, %v95
    %v97 = vrot.slane %v83, %v96
    %v98 = vunpack.c.l.u8.bf16 %v90
    %v99 = vunpack.c.h.u8.bf16 %v90
    %v100 = vunpack.c.l.u8.bf16 %v97
    %v101 = vunpack.c.h.u8.bf16 %v97
    %v102 = vld [vmem:[#allocation2] sm:$0xff]
    %v103 = vld [vmem:[#allocation2 + $0x8] sm:$0xff]
    %v104 = vld [vmem:[#allocation2 + $0x10] sm:$0xff]
    %v105 = vld [vmem:[#allocation2 + $0x18] sm:$0xff]
    %v106 = vld [vmem:[#allocation2 + $0x20] sm:$0xff]
    %v107 = vld [vmem:[#allocation2 + $0x28] sm:$0xff]
    %v108 = vld [vmem:[#allocation2 + $0x30] sm:$0xff]
    %v109 = vld [vmem:[#allocation2 + $0x38] sm:$0xff]
    %v110 = vld [vmem:[#allocation2 + $0x40] sm:$0xff]
    %v111 = vld [vmem:[#allocation2 + $0x48] sm:$0xff]
    %v112 = vld [vmem:[#allocation2 + $0x50] sm:$0xff]
    %v113 = vld [vmem:[#allocation2 + $0x58] sm:$0xff]
    %v114 = vld [vmem:[#allocation2 + $0x60] sm:$0xff]
    %v115 = vld [vmem:[#allocation2 + $0x68] sm:$0xff]
    %v116 = vld [vmem:[#allocation2 + $0x70] sm:$0xff]
    %v117 = vld [vmem:[#allocation2 + $0x78] sm:$0xff]
    %v118 = vld [vmem:[#allocation2 + $0x80] sm:$0xff]
    %v119 = vld [vmem:[#allocation2 + $0x88] sm:$0xff]
    %v120 = vld [vmem:[#allocation2 + $0x90] sm:$0xff]
    %v121 = vld [vmem:[#allocation2 + $0x98] sm:$0xff]
    %v122 = vld [vmem:[#allocation2 + $0xa0] sm:$0xff]
    %v123 = vld [vmem:[#allocation2 + $0xa8] sm:$0xff]
    %v124 = vld [vmem:[#allocation2 + $0xb0] sm:$0xff]
    %v125 = vld [vmem:[#allocation2 + $0xb8] sm:$0xff]
    %v126 = vld [vmem:[#allocation2 + $0xc0] sm:$0xff]
    %v127 = vld [vmem:[#allocation2 + $0xc8] sm:$0xff]
    %v128 = vld [vmem:[#allocation2 + $0xd0] sm:$0xff]
    %v129 = vld [vmem:[#allocation2 + $0xd8] sm:$0xff]
    %v130 = vld [vmem:[#allocation2 + $0xe0] sm:$0xff]
    %v131 = vld [vmem:[#allocation2 + $0xe8] sm:$0xff]
    %v132 = vld [vmem:[#allocation2 + $0xf0] sm:$0xff]
    %v133 = vld [vmem:[#allocation2 + $0xf8] sm:$0xff]
    %v134 = vld [vmem:[#allocation2 + $0x100] sm:$0xff]
    %v135 = vld [vmem:[#allocation2 + $0x108] sm:$0xff]
    %v136 = vld [vmem:[#allocation2 + $0x110] sm:$0xff]
    %v137 = vld [vmem:[#allocation2 + $0x118] sm:$0xff]
    %v138 = vld [vmem:[#allocation2 + $0x120] sm:$0xff]
    %v139 = vld [vmem:[#allocation2 + $0x128] sm:$0xff]
    %v140 = vld [vmem:[#allocation2 + $0x130] sm:$0xff]
    %v141 = vld [vmem:[#allocation2 + $0x138] sm:$0xff]
    %v142 = vld [vmem:[#allocation2 + $0x140] sm:$0xff]
    %v143 = vld [vmem:[#allocation2 + $0x148] sm:$0xff]
    %v144 = vld [vmem:[#allocation2 + $0x150] sm:$0xff]
    %v145 = vld [vmem:[#allocation2 + $0x158] sm:$0xff]
    %v146 = vld [vmem:[#allocation2 + $0x160] sm:$0xff]
    %v147 = vld [vmem:[#allocation2 + $0x168] sm:$0xff]
    %v148 = vld [vmem:[#allocation2 + $0x170] sm:$0xff]
    %v149 = vld [vmem:[#allocation2 + $0x178] sm:$0xff]
    %v150 = vld [vmem:[#allocation2 + $0x180] sm:$0xff]
    %v151 = vld [vmem:[#allocation2 + $0x188] sm:$0xff]
    %v152 = vld [vmem:[#allocation2 + $0x190] sm:$0xff]
    %v153 = vld [vmem:[#allocation2 + $0x198] sm:$0xff]
    %v154 = vld [vmem:[#allocation2 + $0x1a0] sm:$0xff]
    %v155 = vld [vmem:[#allocation2 + $0x1a8] sm:$0xff]
    %v156 = vld [vmem:[#allocation2 + $0x1b0] sm:$0xff]
    %v157 = vld [vmem:[#allocation2 + $0x1b8] sm:$0xff]
    %v158 = vld [vmem:[#allocation2 + $0x1c0] sm:$0xff]
    %v159 = vld [vmem:[#allocation2 + $0x1c8] sm:$0xff]
    %v160 = vld [vmem:[#allocation2 + $0x1d0] sm:$0xff]
    %v161 = vld [vmem:[#allocation2 + $0x1d8] sm:$0xff]
    %v162 = vld [vmem:[#allocation2 + $0x1e0] sm:$0xff]
    %v163 = vld [vmem:[#allocation2 + $0x1e8] sm:$0xff]
    %v164 = vld [vmem:[#allocation2 + $0x1f0] sm:$0xff]
    %v165 = vld [vmem:[#allocation2 + $0x1f8] sm:$0xff]
    %v166 = vld [vmem:[#allocation2 + $0x200] sm:$0xff]
    %v167 = vld [vmem:[#allocation2 + $0x208] sm:$0xff]
    %v168 = vld [vmem:[#allocation2 + $0x210] sm:$0xff]
    %v169 = vld [vmem:[#allocation2 + $0x218] sm:$0xff]
    %v170 = vld [vmem:[#allocation2 + $0x220] sm:$0xff]
    %v171 = vld [vmem:[#allocation2 + $0x228] sm:$0xff]
    %v172 = vld [vmem:[#allocation2 + $0x230] sm:$0xff]
    %v173 = vld [vmem:[#allocation2 + $0x238] sm:$0xff]
    %v174 = vld [vmem:[#allocation2 + $0x240] sm:$0xff]
    %v175 = vld [vmem:[#allocation2 + $0x248] sm:$0xff]
    %v176 = vld [vmem:[#allocation2 + $0x250] sm:$0xff]
    %v177 = vld [vmem:[#allocation2 + $0x258] sm:$0xff]
    %v178 = vld [vmem:[#allocation2 + $0x260] sm:$0xff]
    %v179 = vld [vmem:[#allocation2 + $0x268] sm:$0xff]
    %v180 = vld [vmem:[#allocation2 + $0x270] sm:$0xff]
    %v181 = vld [vmem:[#allocation2 + $0x278] sm:$0xff]
    %v182 = vld [vmem:[#allocation2 + $0x280] sm:$0xff]
    %v183 = vld [vmem:[#allocation2 + $0x288] sm:$0xff]
    %v184 = vld [vmem:[#allocation2 + $0x290] sm:$0xff]
    %v185 = vld [vmem:[#allocation2 + $0x298] sm:$0xff]
    %v186 = vld [vmem:[#allocation2 + $0x2a0] sm:$0xff]
    %v187 = vld [vmem:[#allocation2 + $0x2a8] sm:$0xff]
    %v188 = vld [vmem:[#allocation2 + $0x2b0] sm:$0xff]
    %v189 = vld [vmem:[#allocation2 + $0x2b8] sm:$0xff]
    %v190 = vld [vmem:[#allocation2 + $0x2c0] sm:$0xff]
    %v191 = vld [vmem:[#allocation2 + $0x2c8] sm:$0xff]
    %v192 = vld [vmem:[#allocation2 + $0x2d0] sm:$0xff]
    %v193 = vld [vmem:[#allocation2 + $0x2d8] sm:$0xff]
    %v194 = vld [vmem:[#allocation2 + $0x2e0] sm:$0xff]
    %v195 = vld [vmem:[#allocation2 + $0x2e8] sm:$0xff]
    %v196 = vld [vmem:[#allocation2 + $0x2f0] sm:$0xff]
    %v197 = vld [vmem:[#allocation2 + $0x2f8] sm:$0xff]
    %v198 = vld [vmem:[#allocation2 + $0x300] sm:$0xff]
    %v199 = vld [vmem:[#allocation2 + $0x308] sm:$0xff]
    %v200 = vld [vmem:[#allocation2 + $0x310] sm:$0xff]
    %v201 = vld [vmem:[#allocation2 + $0x318] sm:$0xff]
    %v202 = vld [vmem:[#allocation2 + $0x320] sm:$0xff]
    %v203 = vld [vmem:[#allocation2 + $0x328] sm:$0xff]
    %v204 = vld [vmem:[#allocation2 + $0x330] sm:$0xff]
    %v205 = vld [vmem:[#allocation2 + $0x338] sm:$0xff]
    %v206 = vld [vmem:[#allocation2 + $0x340] sm:$0xff]
    %v207 = vld [vmem:[#allocation2 + $0x348] sm:$0xff]
    %v208 = vld [vmem:[#allocation2 + $0x350] sm:$0xff]
    %v209 = vld [vmem:[#allocation2 + $0x358] sm:$0xff]
    %v210 = vld [vmem:[#allocation2 + $0x360] sm:$0xff]
    %v211 = vld [vmem:[#allocation2 + $0x368] sm:$0xff]
    %v212 = vld [vmem:[#allocation2 + $0x370] sm:$0xff]
    %v213 = vld [vmem:[#allocation2 + $0x378] sm:$0xff]
    %v214 = vld [vmem:[#allocation2 + $0x380] sm:$0xff]
    %v215 = vld [vmem:[#allocation2 + $0x388] sm:$0xff]
    %v216 = vld [vmem:[#allocation2 + $0x390] sm:$0xff]
    %v217 = vld [vmem:[#allocation2 + $0x398] sm:$0xff]
    %v218 = vld [vmem:[#allocation2 + $0x3a0] sm:$0xff]
    %v219 = vld [vmem:[#allocation2 + $0x3a8] sm:$0xff]
    %v220 = vld [vmem:[#allocation2 + $0x3b0] sm:$0xff]
    %v221 = vld [vmem:[#allocation2 + $0x3b8] sm:$0xff]
    %v222 = vld [vmem:[#allocation2 + $0x3c0] sm:$0xff]
    %v223 = vld [vmem:[#allocation2 + $0x3c8] sm:$0xff]
    %v224 = vld [vmem:[#allocation2 + $0x3d0] sm:$0xff]
    %v225 = vld [vmem:[#allocation2 + $0x3d8] sm:$0xff]
    %v226 = vld [vmem:[#allocation2 + $0x3e0] sm:$0xff]
    %v227 = vld [vmem:[#allocation2 + $0x3e8] sm:$0xff]
    %v228 = vld [vmem:[#allocation2 + $0x3f0] sm:$0xff]
    %v229 = vld [vmem:[#allocation2 + $0x3f8] sm:$0xff]
    %v230 = vld [vmem:[#allocation2 + $0x400] sm:$0xff]
    %v231 = vld [vmem:[#allocation2 + $0x408] sm:$0xff]
    %v232 = vld [vmem:[#allocation2 + $0x410] sm:$0xff]
    %v233 = vld [vmem:[#allocation2 + $0x418] sm:$0xff]
    %v234 = vld [vmem:[#allocation2 + $0x420] sm:$0xff]
    %v235 = vld [vmem:[#allocation2 + $0x428] sm:$0xff]
    %v236 = vld [vmem:[#allocation2 + $0x430] sm:$0xff]
    %v237 = vld [vmem:[#allocation2 + $0x438] sm:$0xff]
    %v238 = vld [vmem:[#allocation2 + $0x440] sm:$0xff]
    %v239 = vld [vmem:[#allocation2 + $0x448] sm:$0xff]
    %v240 = vld [vmem:[#allocation2 + $0x450] sm:$0xff]
    %v241 = vld [vmem:[#allocation2 + $0x458] sm:$0xff]
    %v242 = vld [vmem:[#allocation2 + $0x460] sm:$0xff]
    %v243 = vld [vmem:[#allocation2 + $0x468] sm:$0xff]
    %v244 = vld [vmem:[#allocation2 + $0x470] sm:$0xff]
    %v245 = vld [vmem:[#allocation2 + $0x478] sm:$0xff]
    %v246 = vld [vmem:[#allocation2 + $0x480] sm:$0xff]
    %v247 = vld [vmem:[#allocation2 + $0x488] sm:$0xff]
    %v248 = vld [vmem:[#allocation2 + $0x490] sm:$0xff]
    %v249 = vld [vmem:[#allocation2 + $0x498] sm:$0xff]
    %v250 = vld [vmem:[#allocation2 + $0x4a0] sm:$0xff]
    %v251 = vld [vmem:[#allocation2 + $0x4a8] sm:$0xff]
    %v252 = vld [vmem:[#allocation2 + $0x4b0] sm:$0xff]
    %v253 = vld [vmem:[#allocation2 + $0x4b8] sm:$0xff]
    %v254 = vld [vmem:[#allocation2 + $0x4c0] sm:$0xff]
    %v255 = vld [vmem:[#allocation2 + $0x4c8] sm:$0xff]
    %v256 = vld [vmem:[#allocation2 + $0x4d0] sm:$0xff]
    %v257 = vld [vmem:[#allocation2 + $0x4d8] sm:$0xff]
    %v258 = vld [vmem:[#allocation2 + $0x4e0] sm:$0xff]
    %v259 = vld [vmem:[#allocation2 + $0x4e8] sm:$0xff]
    %v260 = vld [vmem:[#allocation2 + $0x4f0] sm:$0xff]
    %v261 = vld [vmem:[#allocation2 + $0x4f8] sm:$0xff]
    %v262 = vld [vmem:[#allocation2 + $0x500] sm:$0xff]
    %v263 = vld [vmem:[#allocation2 + $0x508] sm:$0xff]
    %v264 = vld [vmem:[#allocation2 + $0x510] sm:$0xff]
    %v265 = vld [vmem:[#allocation2 + $0x518] sm:$0xff]
    %v266 = vld [vmem:[#allocation2 + $0x520] sm:$0xff]
    %v267 = vld [vmem:[#allocation2 + $0x528] sm:$0xff]
    %v268 = vld [vmem:[#allocation2 + $0x530] sm:$0xff]
    %v269 = vld [vmem:[#allocation2 + $0x538] sm:$0xff]
    %v270 = vld [vmem:[#allocation2 + $0x540] sm:$0xff]
    %v271 = vld [vmem:[#allocation2 + $0x548] sm:$0xff]
    %v272 = vld [vmem:[#allocation2 + $0x550] sm:$0xff]
    %v273 = vld [vmem:[#allocation2 + $0x558] sm:$0xff]
    %v274 = vld [vmem:[#allocation2 + $0x560] sm:$0xff]
    %v275 = vld [vmem:[#allocation2 + $0x568] sm:$0xff]
    %v276 = vld [vmem:[#allocation2 + $0x570] sm:$0xff]
    %v277 = vld [vmem:[#allocation2 + $0x578] sm:$0xff]
    %v278 = vld [vmem:[#allocation2 + $0x580] sm:$0xff]
    %v279 = vld [vmem:[#allocation2 + $0x588] sm:$0xff]
    %v280 = vld [vmem:[#allocation2 + $0x590] sm:$0xff]
    %v281 = vld [vmem:[#allocation2 + $0x598] sm:$0xff]
    %v282 = vld [vmem:[#allocation2 + $0x5a0] sm:$0xff]
    %v283 = vld [vmem:[#allocation2 + $0x5a8] sm:$0xff]
    %v284 = vld [vmem:[#allocation2 + $0x5b0] sm:$0xff]
    %v285 = vld [vmem:[#allocation2 + $0x5b8] sm:$0xff]
    %v286 = vld [vmem:[#allocation2 + $0x5c0] sm:$0xff]
    %v287 = vld [vmem:[#allocation2 + $0x5c8] sm:$0xff]
    %v288 = vld [vmem:[#allocation2 + $0x5d0] sm:$0xff]
    %v289 = vld [vmem:[#allocation2 + $0x5d8] sm:$0xff]
    %v290 = vld [vmem:[#allocation2 + $0x5e0] sm:$0xff]
    %v291 = vld [vmem:[#allocation2 + $0x5e8] sm:$0xff]
    %v292 = vld [vmem:[#allocation2 + $0x5f0] sm:$0xff]
    %v293 = vld [vmem:[#allocation2 + $0x5f8] sm:$0xff]
    %v294 = vld [vmem:[#allocation2 + $0x600] sm:$0xff]
    %v295 = vld [vmem:[#allocation2 + $0x608] sm:$0xff]
    %v296 = vld [vmem:[#allocation2 + $0x610] sm:$0xff]
    %v297 = vld [vmem:[#allocation2 + $0x618] sm:$0xff]
    %v298 = vld [vmem:[#allocation2 + $0x620] sm:$0xff]
    %v299 = vld [vmem:[#allocation2 + $0x628] sm:$0xff]
    %v300 = vld [vmem:[#allocation2 + $0x630] sm:$0xff]
    %v301 = vld [vmem:[#allocation2 + $0x638] sm:$0xff]
    %v302 = vld [vmem:[#allocation2 + $0x640] sm:$0xff]
    %v303 = vld [vmem:[#allocation2 + $0x648] sm:$0xff]
    %v304 = vld [vmem:[#allocation2 + $0x650] sm:$0xff]
    %v305 = vld [vmem:[#allocation2 + $0x658] sm:$0xff]
    %v306 = vld [vmem:[#allocation2 + $0x660] sm:$0xff]
    %v307 = vld [vmem:[#allocation2 + $0x668] sm:$0xff]
    %v308 = vld [vmem:[#allocation2 + $0x670] sm:$0xff]
    %v309 = vld [vmem:[#allocation2 + $0x678] sm:$0xff]
    %v310 = vld [vmem:[#allocation2 + $0x680] sm:$0xff]
    %v311 = vld [vmem:[#allocation2 + $0x688] sm:$0xff]
    %v312 = vld [vmem:[#allocation2 + $0x690] sm:$0xff]
    %v313 = vld [vmem:[#allocation2 + $0x698] sm:$0xff]
    %v314 = vld [vmem:[#allocation2 + $0x6a0] sm:$0xff]
    %v315 = vld [vmem:[#allocation2 + $0x6a8] sm:$0xff]
    %v316 = vld [vmem:[#allocation2 + $0x6b0] sm:$0xff]
    %v317 = vld [vmem:[#allocation2 + $0x6b8] sm:$0xff]
    %v318 = vld [vmem:[#allocation2 + $0x6c0] sm:$0xff]
    %v319 = vld [vmem:[#allocation2 + $0x6c8] sm:$0xff]
    %v320 = vld [vmem:[#allocation2 + $0x6d0] sm:$0xff]
    %v321 = vld [vmem:[#allocation2 + $0x6d8] sm:$0xff]
    %v322 = vld [vmem:[#allocation2 + $0x6e0] sm:$0xff]
    %v323 = vld [vmem:[#allocation2 + $0x6e8] sm:$0xff]
    %v324 = vld [vmem:[#allocation2 + $0x6f0] sm:$0xff]
    %v325 = vld [vmem:[#allocation2 + $0x6f8] sm:$0xff]
    %v326 = vld [vmem:[#allocation2 + $0x700] sm:$0xff]
    %v327 = vld [vmem:[#allocation2 + $0x708] sm:$0xff]
    %v328 = vld [vmem:[#allocation2 + $0x710] sm:$0xff]
    %v329 = vld [vmem:[#allocation2 + $0x718] sm:$0xff]
    %v330 = vld [vmem:[#allocation2 + $0x720] sm:$0xff]
    %v331 = vld [vmem:[#allocation2 + $0x728] sm:$0xff]
    %v332 = vld [vmem:[#allocation2 + $0x730] sm:$0xff]
    %v333 = vld [vmem:[#allocation2 + $0x738] sm:$0xff]
    %v334 = vld [vmem:[#allocation2 + $0x740] sm:$0xff]
    %v335 = vld [vmem:[#allocation2 + $0x748] sm:$0xff]
    %v336 = vld [vmem:[#allocation2 + $0x750] sm:$0xff]
    %v337 = vld [vmem:[#allocation2 + $0x758] sm:$0xff]
    %v338 = vld [vmem:[#allocation2 + $0x760] sm:$0xff]
    %v339 = vld [vmem:[#allocation2 + $0x768] sm:$0xff]
    %v340 = vld [vmem:[#allocation2 + $0x770] sm:$0xff]
    %v341 = vld [vmem:[#allocation2 + $0x778] sm:$0xff]
    %v342 = vld [vmem:[#allocation2 + $0x780] sm:$0xff]
    %v343 = vld [vmem:[#allocation2 + $0x788] sm:$0xff]
    %v344 = vld [vmem:[#allocation2 + $0x790] sm:$0xff]
    %v345 = vld [vmem:[#allocation2 + $0x798] sm:$0xff]
    %v346 = vld [vmem:[#allocation2 + $0x7a0] sm:$0xff]
    %v347 = vld [vmem:[#allocation2 + $0x7a8] sm:$0xff]
    %v348 = vld [vmem:[#allocation2 + $0x7b0] sm:$0xff]
    %v349 = vld [vmem:[#allocation2 + $0x7b8] sm:$0xff]
    %v350 = vld [vmem:[#allocation2 + $0x7c0] sm:$0xff]
    %v351 = vld [vmem:[#allocation2 + $0x7c8] sm:$0xff]
    %v352 = vld [vmem:[#allocation2 + $0x7d0] sm:$0xff]
    %v353 = vld [vmem:[#allocation2 + $0x7d8] sm:$0xff]
    %v354 = vld [vmem:[#allocation2 + $0x7e0] sm:$0xff]
    %v355 = vld [vmem:[#allocation2 + $0x7e8] sm:$0xff]
    %v356 = vld [vmem:[#allocation2 + $0x7f0] sm:$0xff]
    %v357 = vld [vmem:[#allocation2 + $0x7f8] sm:$0xff]
    %v358 = vld [vmem:[%s2] sm:$0xf]
    %v360 = vlaneseq
    %v361 = vshrl.u32 %v360, 7
    %v362 = vsub.s32 0, %v361
    %v363 = vrot.slane %v358, %v362
    %v364 = vlaneseq
    %v365 = vshrl.u32 %v364, 7
    %v366 = vsub.s32 1, %v365
    %v367 = vrot.slane %v358, %v366
    %v368 = vlaneseq
    %v369 = vshrl.u32 %v368, 7
    %v370 = vsub.s32 2, %v369
    %v371 = vrot.slane %v358, %v370
    %v372 = vlaneseq
    %v373 = vshrl.u32 %v372, 7
    %v374 = vsub.s32 3, %v373
    %v375 = vrot.slane %v358, %v374
    %v384 = vunpack.c.l.b16 %v98
    %v385 = vunpack.c.h.b16 %v98
    %v386 = vunpack.c.l.b16 %v99
    %v387 = vunpack.c.h.b16 %v99
    %v388 = vunpack.c.l.b16 %v100
    %v389 = vunpack.c.h.b16 %v100
    %v390 = vunpack.c.l.b16 %v101
    %v391 = vunpack.c.h.b16 %v101
    %v392 = vpack.c.b16 %v384, %v384
    %v393 = vpack.c.b16 %v385, %v385
    %v394 = vpack.c.b16 %v386, %v386
    %v395 = vpack.c.b16 %v387, %v387
    %v396 = vpack.c.b16 %v388, %v388
    %v397 = vpack.c.b16 %v389, %v389
    %v398 = vpack.c.b16 %v390, %v390
    %v399 = vpack.c.b16 %v391, %v391
    %v664 = vunpack.c.l.b16 %v102
    %v665 = vunpack.c.h.b16 %v102
    %v666 = vunpack.c.l.b16 %v103
    %v667 = vunpack.c.h.b16 %v103
    %v668 = vunpack.c.l.b16 %v104
    %v669 = vunpack.c.h.b16 %v104
    %v670 = vunpack.c.l.b16 %v105
    %v671 = vunpack.c.h.b16 %v105
    %v672 = vunpack.c.l.b16 %v106
    %v673 = vunpack.c.h.b16 %v106
    %v674 = vunpack.c.l.b16 %v107
    %v675 = vunpack.c.h.b16 %v107
    %v676 = vunpack.c.l.b16 %v108
    %v677 = vunpack.c.h.b16 %v108
    %v678 = vunpack.c.l.b16 %v109
    %v679 = vunpack.c.h.b16 %v109
    %v680 = vunpack.c.l.b16 %v110
    %v681 = vunpack.c.h.b16 %v110
    %v682 = vunpack.c.l.b16 %v111
    %v683 = vunpack.c.h.b16 %v111
    %v684 = vunpack.c.l.b16 %v112
    %v685 = vunpack.c.h.b16 %v112
    %v686 = vunpack.c.l.b16 %v113
    %v687 = vunpack.c.h.b16 %v113
    %v688 = vunpack.c.l.b16 %v114
    %v689 = vunpack.c.h.b16 %v114
    %v690 = vunpack.c.l.b16 %v115
    %v691 = vunpack.c.h.b16 %v115
    %v692 = vunpack.c.l.b16 %v116
    %v693 = vunpack.c.h.b16 %v116
    %v694 = vunpack.c.l.b16 %v117
    %v695 = vunpack.c.h.b16 %v117
    %v696 = vunpack.c.l.b16 %v118
    %v697 = vunpack.c.h.b16 %v118
    %v698 = vunpack.c.l.b16 %v119
    %v699 = vunpack.c.h.b16 %v119
    %v700 = vunpack.c.l.b16 %v120
    %v701 = vunpack.c.h.b16 %v120
    %v702 = vunpack.c.l.b16 %v121
    %v703 = vunpack.c.h.b16 %v121
    %v704 = vunpack.c.l.b16 %v122
    %v705 = vunpack.c.h.b16 %v122
    %v706 = vunpack.c.l.b16 %v123
    %v707 = vunpack.c.h.b16 %v123
    %v708 = vunpack.c.l.b16 %v124
    %v709 = vunpack.c.h.b16 %v124
    %v710 = vunpack.c.l.b16 %v125
    %v711 = vunpack.c.h.b16 %v125
    %v712 = vunpack.c.l.b16 %v126
    %v713 = vunpack.c.h.b16 %v126
    %v714 = vunpack.c.l.b16 %v127
    %v715 = vunpack.c.h.b16 %v127
    %v716 = vunpack.c.l.b16 %v128
    %v717 = vunpack.c.h.b16 %v128
    %v718 = vunpack.c.l.b16 %v129
    %v719 = vunpack.c.h.b16 %v129
    %v720 = vunpack.c.l.b16 %v130
    %v721 = vunpack.c.h.b16 %v130
    %v722 = vunpack.c.l.b16 %v131
    %v723 = vunpack.c.h.b16 %v131
    %v724 = vunpack.c.l.b16 %v132
    %v725 = vunpack.c.h.b16 %v132
    %v726 = vunpack.c.l.b16 %v133
    %v727 = vunpack.c.h.b16 %v133
    %v728 = vunpack.c.l.b16 %v134
    %v729 = vunpack.c.h.b16 %v134
    %v730 = vunpack.c.l.b16 %v135
    %v731 = vunpack.c.h.b16 %v135
    %v732 = vunpack.c.l.b16 %v136
    %v733 = vunpack.c.h.b16 %v136
    %v734 = vunpack.c.l.b16 %v137
    %v735 = vunpack.c.h.b16 %v137
    %v736 = vunpack.c.l.b16 %v138
    %v737 = vunpack.c.h.b16 %v138
    %v738 = vunpack.c.l.b16 %v139
    %v739 = vunpack.c.h.b16 %v139
    %v740 = vunpack.c.l.b16 %v140
    %v741 = vunpack.c.h.b16 %v140
    %v742 = vunpack.c.l.b16 %v141
    %v743 = vunpack.c.h.b16 %v141
    %v744 = vunpack.c.l.b16 %v142
    %v745 = vunpack.c.h.b16 %v142
    %v746 = vunpack.c.l.b16 %v143
    %v747 = vunpack.c.h.b16 %v143
    %v748 = vunpack.c.l.b16 %v144
    %v749 = vunpack.c.h.b16 %v144
    %v750 = vunpack.c.l.b16 %v145
    %v751 = vunpack.c.h.b16 %v145
    %v752 = vunpack.c.l.b16 %v146
    %v753 = vunpack.c.h.b16 %v146
    %v754 = vunpack.c.l.b16 %v147
    %v755 = vunpack.c.h.b16 %v147
    %v756 = vunpack.c.l.b16 %v148
    %v757 = vunpack.c.h.b16 %v148
    %v758 = vunpack.c.l.b16 %v149
    %v759 = vunpack.c.h.b16 %v149
    %v760 = vunpack.c.l.b16 %v150
    %v761 = vunpack.c.h.b16 %v150
    %v762 = vunpack.c.l.b16 %v151
    %v763 = vunpack.c.h.b16 %v151
    %v764 = vunpack.c.l.b16 %v152
    %v765 = vunpack.c.h.b16 %v152
    %v766 = vunpack.c.l.b16 %v153
    %v767 = vunpack.c.h.b16 %v153
    %v768 = vunpack.c.l.b16 %v154
    %v769 = vunpack.c.h.b16 %v154
    %v770 = vunpack.c.l.b16 %v155
    %v771 = vunpack.c.h.b16 %v155
    %v772 = vunpack.c.l.b16 %v156
    %v773 = vunpack.c.h.b16 %v156
    %v774 = vunpack.c.l.b16 %v157
    %v775 = vunpack.c.h.b16 %v157
    %v776 = vunpack.c.l.b16 %v158
    %v777 = vunpack.c.h.b16 %v158
    %v778 = vunpack.c.l.b16 %v159
    %v779 = vunpack.c.h.b16 %v159
    %v780 = vunpack.c.l.b16 %v160
    %v781 = vunpack.c.h.b16 %v160
    %v782 = vunpack.c.l.b16 %v161
    %v783 = vunpack.c.h.b16 %v161
    %v784 = vunpack.c.l.b16 %v162
    %v785 = vunpack.c.h.b16 %v162
    %v786 = vunpack.c.l.b16 %v163
    %v787 = vunpack.c.h.b16 %v163
    %v788 = vunpack.c.l.b16 %v164
    %v789 = vunpack.c.h.b16 %v164
    %v790 = vunpack.c.l.b16 %v165
    %v791 = vunpack.c.h.b16 %v165
    %v792 = vunpack.c.l.b16 %v166
    %v793 = vunpack.c.h.b16 %v166
    %v794 = vunpack.c.l.b16 %v167
    %v795 = vunpack.c.h.b16 %v167
    %v796 = vunpack.c.l.b16 %v168
    %v797 = vunpack.c.h.b16 %v168
    %v798 = vunpack.c.l.b16 %v169
    %v799 = vunpack.c.h.b16 %v169
    %v800 = vunpack.c.l.b16 %v170
    %v801 = vunpack.c.h.b16 %v170
    %v802 = vunpack.c.l.b16 %v171
    %v803 = vunpack.c.h.b16 %v171
    %v804 = vunpack.c.l.b16 %v172
    %v805 = vunpack.c.h.b16 %v172
    %v806 = vunpack.c.l.b16 %v173
    %v807 = vunpack.c.h.b16 %v173
    %v808 = vunpack.c.l.b16 %v174
    %v809 = vunpack.c.h.b16 %v174
    %v810 = vunpack.c.l.b16 %v175
    %v811 = vunpack.c.h.b16 %v175
    %v812 = vunpack.c.l.b16 %v176
    %v813 = vunpack.c.h.b16 %v176
    %v814 = vunpack.c.l.b16 %v177
    %v815 = vunpack.c.h.b16 %v177
    %v816 = vunpack.c.l.b16 %v178
    %v817 = vunpack.c.h.b16 %v178
    %v818 = vunpack.c.l.b16 %v179
    %v819 = vunpack.c.h.b16 %v179
    %v820 = vunpack.c.l.b16 %v180
    %v821 = vunpack.c.h.b16 %v180
    %v822 = vunpack.c.l.b16 %v181
    %v823 = vunpack.c.h.b16 %v181
    %v824 = vunpack.c.l.b16 %v182
    %v825 = vunpack.c.h.b16 %v182
    %v826 = vunpack.c.l.b16 %v183
    %v827 = vunpack.c.h.b16 %v183
    %v828 = vunpack.c.l.b16 %v184
    %v829 = vunpack.c.h.b16 %v184
    %v830 = vunpack.c.l.b16 %v185
    %v831 = vunpack.c.h.b16 %v185
    %v832 = vunpack.c.l.b16 %v186
    %v833 = vunpack.c.h.b16 %v186
    %v834 = vunpack.c.l.b16 %v187
    %v835 = vunpack.c.h.b16 %v187
    %v836 = vunpack.c.l.b16 %v188
    %v837 = vunpack.c.h.b16 %v188
    %v838 = vunpack.c.l.b16 %v189
    %v839 = vunpack.c.h.b16 %v189
    %v840 = vunpack.c.l.b16 %v190
    %v841 = vunpack.c.h.b16 %v190
    %v842 = vunpack.c.l.b16 %v191
    %v843 = vunpack.c.h.b16 %v191
    %v844 = vunpack.c.l.b16 %v192
    %v845 = vunpack.c.h.b16 %v192
    %v846 = vunpack.c.l.b16 %v193
    %v847 = vunpack.c.h.b16 %v193
    %v848 = vunpack.c.l.b16 %v194
    %v849 = vunpack.c.h.b16 %v194
    %v850 = vunpack.c.l.b16 %v195
    %v851 = vunpack.c.h.b16 %v195
    %v852 = vunpack.c.l.b16 %v196
    %v853 = vunpack.c.h.b16 %v196
    %v854 = vunpack.c.l.b16 %v197
    %v855 = vunpack.c.h.b16 %v197
    %v856 = vunpack.c.l.b16 %v198
    %v857 = vunpack.c.h.b16 %v198
    %v858 = vunpack.c.l.b16 %v199
    %v859 = vunpack.c.h.b16 %v199
    %v860 = vunpack.c.l.b16 %v200
    %v861 = vunpack.c.h.b16 %v200
    %v862 = vunpack.c.l.b16 %v201
    %v863 = vunpack.c.h.b16 %v201
    %v864 = vunpack.c.l.b16 %v202
    %v865 = vunpack.c.h.b16 %v202
    %v866 = vunpack.c.l.b16 %v203
    %v867 = vunpack.c.h.b16 %v203
    %v868 = vunpack.c.l.b16 %v204
    %v869 = vunpack.c.h.b16 %v204
    %v870 = vunpack.c.l.b16 %v205
    %v871 = vunpack.c.h.b16 %v205
    %v872 = vunpack.c.l.b16 %v206
    %v873 = vunpack.c.h.b16 %v206
    %v874 = vunpack.c.l.b16 %v207
    %v875 = vunpack.c.h.b16 %v207
    %v876 = vunpack.c.l.b16 %v208
    %v877 = vunpack.c.h.b16 %v208
    %v878 = vunpack.c.l.b16 %v209
    %v879 = vunpack.c.h.b16 %v209
    %v880 = vunpack.c.l.b16 %v210
    %v881 = vunpack.c.h.b16 %v210
    %v882 = vunpack.c.l.b16 %v211
    %v883 = vunpack.c.h.b16 %v211
    %v884 = vunpack.c.l.b16 %v212
    %v885 = vunpack.c.h.b16 %v212
    %v886 = vunpack.c.l.b16 %v213
    %v887 = vunpack.c.h.b16 %v213
    %v888 = vunpack.c.l.b16 %v214
    %v889 = vunpack.c.h.b16 %v214
    %v890 = vunpack.c.l.b16 %v215
    %v891 = vunpack.c.h.b16 %v215
    %v892 = vunpack.c.l.b16 %v216
    %v893 = vunpack.c.h.b16 %v216
    %v894 = vunpack.c.l.b16 %v217
    %v895 = vunpack.c.h.b16 %v217
    %v896 = vunpack.c.l.b16 %v218
    %v897 = vunpack.c.h.b16 %v218
    %v898 = vunpack.c.l.b16 %v219
    %v899 = vunpack.c.h.b16 %v219
    %v900 = vunpack.c.l.b16 %v220
    %v901 = vunpack.c.h.b16 %v220
    %v902 = vunpack.c.l.b16 %v221
    %v903 = vunpack.c.h.b16 %v221
    %v904 = vunpack.c.l.b16 %v222
    %v905 = vunpack.c.h.b16 %v222
    %v906 = vunpack.c.l.b16 %v223
    %v907 = vunpack.c.h.b16 %v223
    %v908 = vunpack.c.l.b16 %v224
    %v909 = vunpack.c.h.b16 %v224
    %v910 = vunpack.c.l.b16 %v225
    %v911 = vunpack.c.h.b16 %v225
    %v912 = vunpack.c.l.b16 %v226
    %v913 = vunpack.c.h.b16 %v226
    %v914 = vunpack.c.l.b16 %v227
    %v915 = vunpack.c.h.b16 %v227
    %v916 = vunpack.c.l.b16 %v228
    %v917 = vunpack.c.h.b16 %v228
    %v918 = vunpack.c.l.b16 %v229
    %v919 = vunpack.c.h.b16 %v229
    %v920 = vunpack.c.l.b16 %v230
    %v921 = vunpack.c.h.b16 %v230
    %v922 = vunpack.c.l.b16 %v231
    %v923 = vunpack.c.h.b16 %v231
    %v924 = vunpack.c.l.b16 %v232
    %v925 = vunpack.c.h.b16 %v232
    %v926 = vunpack.c.l.b16 %v233
    %v927 = vunpack.c.h.b16 %v233
    %v928 = vunpack.c.l.b16 %v234
    %v929 = vunpack.c.h.b16 %v234
    %v930 = vunpack.c.l.b16 %v235
    %v931 = vunpack.c.h.b16 %v235
    %v932 = vunpack.c.l.b16 %v236
    %v933 = vunpack.c.h.b16 %v236
    %v934 = vunpack.c.l.b16 %v237
    %v935 = vunpack.c.h.b16 %v237
    %v936 = vunpack.c.l.b16 %v238
    %v937 = vunpack.c.h.b16 %v238
    %v938 = vunpack.c.l.b16 %v239
    %v939 = vunpack.c.h.b16 %v239
    %v940 = vunpack.c.l.b16 %v240
    %v941 = vunpack.c.h.b16 %v240
    %v942 = vunpack.c.l.b16 %v241
    %v943 = vunpack.c.h.b16 %v241
    %v944 = vunpack.c.l.b16 %v242
    %v945 = vunpack.c.h.b16 %v242
    %v946 = vunpack.c.l.b16 %v243
    %v947 = vunpack.c.h.b16 %v243
    %v948 = vunpack.c.l.b16 %v244
    %v949 = vunpack.c.h.b16 %v244
    %v950 = vunpack.c.l.b16 %v245
    %v951 = vunpack.c.h.b16 %v245
    %v952 = vunpack.c.l.b16 %v246
    %v953 = vunpack.c.h.b16 %v246
    %v954 = vunpack.c.l.b16 %v247
    %v955 = vunpack.c.h.b16 %v247
    %v956 = vunpack.c.l.b16 %v248
    %v957 = vunpack.c.h.b16 %v248
    %v958 = vunpack.c.l.b16 %v249
    %v959 = vunpack.c.h.b16 %v249
    %v960 = vunpack.c.l.b16 %v250
    %v961 = vunpack.c.h.b16 %v250
    %v962 = vunpack.c.l.b16 %v251
    %v963 = vunpack.c.h.b16 %v251
    %v964 = vunpack.c.l.b16 %v252
    %v965 = vunpack.c.h.b16 %v252
    %v966 = vunpack.c.l.b16 %v253
    %v967 = vunpack.c.h.b16 %v253
    %v968 = vunpack.c.l.b16 %v254
    %v969 = vunpack.c.h.b16 %v254
    %v970 = vunpack.c.l.b16 %v255
    %v971 = vunpack.c.h.b16 %v255
    %v972 = vunpack.c.l.b16 %v256
    %v973 = vunpack.c.h.b16 %v256
    %v974 = vunpack.c.l.b16 %v257
    %v975 = vunpack.c.h.b16 %v257
    %v976 = vunpack.c.l.b16 %v258
    %v977 = vunpack.c.h.b16 %v258
    %v978 = vunpack.c.l.b16 %v259
    %v979 = vunpack.c.h.b16 %v259
    %v980 = vunpack.c.l.b16 %v260
    %v981 = vunpack.c.h.b16 %v260
    %v982 = vunpack.c.l.b16 %v261
    %v983 = vunpack.c.h.b16 %v261
    %v984 = vunpack.c.l.b16 %v262
    %v985 = vunpack.c.h.b16 %v262
    %v986 = vunpack.c.l.b16 %v263
    %v987 = vunpack.c.h.b16 %v263
    %v988 = vunpack.c.l.b16 %v264
    %v989 = vunpack.c.h.b16 %v264
    %v990 = vunpack.c.l.b16 %v265
    %v991 = vunpack.c.h.b16 %v265
    %v992 = vunpack.c.l.b16 %v266
    %v993 = vunpack.c.h.b16 %v266
    %v994 = vunpack.c.l.b16 %v267
    %v995 = vunpack.c.h.b16 %v267
    %v996 = vunpack.c.l.b16 %v268
    %v997 = vunpack.c.h.b16 %v268
    %v998 = vunpack.c.l.b16 %v269
    %v999 = vunpack.c.h.b16 %v269
    %v1000 = vunpack.c.l.b16 %v270
    %v1001 = vunpack.c.h.b16 %v270
    %v1002 = vunpack.c.l.b16 %v271
    %v1003 = vunpack.c.h.b16 %v271
    %v1004 = vunpack.c.l.b16 %v272
    %v1005 = vunpack.c.h.b16 %v272
    %v1006 = vunpack.c.l.b16 %v273
    %v1007 = vunpack.c.h.b16 %v273
    %v1008 = vunpack.c.l.b16 %v274
    %v1009 = vunpack.c.h.b16 %v274
    %v1010 = vunpack.c.l.b16 %v275
    %v1011 = vunpack.c.h.b16 %v275
    %v1012 = vunpack.c.l.b16 %v276
    %v1013 = vunpack.c.h.b16 %v276
    %v1014 = vunpack.c.l.b16 %v277
    %v1015 = vunpack.c.h.b16 %v277
    %v1016 = vunpack.c.l.b16 %v278
    %v1017 = vunpack.c.h.b16 %v278
    %v1018 = vunpack.c.l.b16 %v279
    %v1019 = vunpack.c.h.b16 %v279
    %v1020 = vunpack.c.l.b16 %v280
    %v1021 = vunpack.c.h.b16 %v280
    %v1022 = vunpack.c.l.b16 %v281
    %v1023 = vunpack.c.h.b16 %v281
    %v1024 = vunpack.c.l.b16 %v282
    %v1025 = vunpack.c.h.b16 %v282
    %v1026 = vunpack.c.l.b16 %v283
    %v1027 = vunpack.c.h.b16 %v283
    %v1028 = vunpack.c.l.b16 %v284
    %v1029 = vunpack.c.h.b16 %v284
    %v1030 = vunpack.c.l.b16 %v285
    %v1031 = vunpack.c.h.b16 %v285
    %v1032 = vunpack.c.l.b16 %v286
    %v1033 = vunpack.c.h.b16 %v286
    %v1034 = vunpack.c.l.b16 %v287
    %v1035 = vunpack.c.h.b16 %v287
    %v1036 = vunpack.c.l.b16 %v288
    %v1037 = vunpack.c.h.b16 %v288
    %v1038 = vunpack.c.l.b16 %v289
    %v1039 = vunpack.c.h.b16 %v289
    %v1040 = vunpack.c.l.b16 %v290
    %v1041 = vunpack.c.h.b16 %v290
    %v1042 = vunpack.c.l.b16 %v291
    %v1043 = vunpack.c.h.b16 %v291
    %v1044 = vunpack.c.l.b16 %v292
    %v1045 = vunpack.c.h.b16 %v292
    %v1046 = vunpack.c.l.b16 %v293
    %v1047 = vunpack.c.h.b16 %v293
    %v1048 = vunpack.c.l.b16 %v294
    %v1049 = vunpack.c.h.b16 %v294
    %v1050 = vunpack.c.l.b16 %v295
    %v1051 = vunpack.c.h.b16 %v295
    %v1052 = vunpack.c.l.b16 %v296
    %v1053 = vunpack.c.h.b16 %v296
    %v1054 = vunpack.c.l.b16 %v297
    %v1055 = vunpack.c.h.b16 %v297
    %v1056 = vunpack.c.l.b16 %v298
    %v1057 = vunpack.c.h.b16 %v298
    %v1058 = vunpack.c.l.b16 %v299
    %v1059 = vunpack.c.h.b16 %v299
    %v1060 = vunpack.c.l.b16 %v300
    %v1061 = vunpack.c.h.b16 %v300
    %v1062 = vunpack.c.l.b16 %v301
    %v1063 = vunpack.c.h.b16 %v301
    %v1064 = vunpack.c.l.b16 %v302
    %v1065 = vunpack.c.h.b16 %v302
    %v1066 = vunpack.c.l.b16 %v303
    %v1067 = vunpack.c.h.b16 %v303
    %v1068 = vunpack.c.l.b16 %v304
    %v1069 = vunpack.c.h.b16 %v304
    %v1070 = vunpack.c.l.b16 %v305
    %v1071 = vunpack.c.h.b16 %v305
    %v1072 = vunpack.c.l.b16 %v306
    %v1073 = vunpack.c.h.b16 %v306
    %v1074 = vunpack.c.l.b16 %v307
    %v1075 = vunpack.c.h.b16 %v307
    %v1076 = vunpack.c.l.b16 %v308
    %v1077 = vunpack.c.h.b16 %v308
    %v1078 = vunpack.c.l.b16 %v309
    %v1079 = vunpack.c.h.b16 %v309
    %v1080 = vunpack.c.l.b16 %v310
    %v1081 = vunpack.c.h.b16 %v310
    %v1082 = vunpack.c.l.b16 %v311
    %v1083 = vunpack.c.h.b16 %v311
    %v1084 = vunpack.c.l.b16 %v312
    %v1085 = vunpack.c.h.b16 %v312
    %v1086 = vunpack.c.l.b16 %v313
    %v1087 = vunpack.c.h.b16 %v313
    %v1088 = vunpack.c.l.b16 %v314
    %v1089 = vunpack.c.h.b16 %v314
    %v1090 = vunpack.c.l.b16 %v315
    %v1091 = vunpack.c.h.b16 %v315
    %v1092 = vunpack.c.l.b16 %v316
    %v1093 = vunpack.c.h.b16 %v316
    %v1094 = vunpack.c.l.b16 %v317
    %v1095 = vunpack.c.h.b16 %v317
    %v1096 = vunpack.c.l.b16 %v318
    %v1097 = vunpack.c.h.b16 %v318
    %v1098 = vunpack.c.l.b16 %v319
    %v1099 = vunpack.c.h.b16 %v319
    %v1100 = vunpack.c.l.b16 %v320
    %v1101 = vunpack.c.h.b16 %v320
    %v1102 = vunpack.c.l.b16 %v321
    %v1103 = vunpack.c.h.b16 %v321
    %v1104 = vunpack.c.l.b16 %v322
    %v1105 = vunpack.c.h.b16 %v322
    %v1106 = vunpack.c.l.b16 %v323
    %v1107 = vunpack.c.h.b16 %v323
    %v1108 = vunpack.c.l.b16 %v324
    %v1109 = vunpack.c.h.b16 %v324
    %v1110 = vunpack.c.l.b16 %v325
    %v1111 = vunpack.c.h.b16 %v325
    %v1112 = vunpack.c.l.b16 %v326
    %v1113 = vunpack.c.h.b16 %v326
    %v1114 = vunpack.c.l.b16 %v327
    %v1115 = vunpack.c.h.b16 %v327
    %v1116 = vunpack.c.l.b16 %v328
    %v1117 = vunpack.c.h.b16 %v328
    %v1118 = vunpack.c.l.b16 %v329
    %v1119 = vunpack.c.h.b16 %v329
    %v1120 = vunpack.c.l.b16 %v330
    %v1121 = vunpack.c.h.b16 %v330
    %v1122 = vunpack.c.l.b16 %v331
    %v1123 = vunpack.c.h.b16 %v331
    %v1124 = vunpack.c.l.b16 %v332
    %v1125 = vunpack.c.h.b16 %v332
    %v1126 = vunpack.c.l.b16 %v333
    %v1127 = vunpack.c.h.b16 %v333
    %v1128 = vunpack.c.l.b16 %v334
    %v1129 = vunpack.c.h.b16 %v334
    %v1130 = vunpack.c.l.b16 %v335
    %v1131 = vunpack.c.h.b16 %v335
    %v1132 = vunpack.c.l.b16 %v336
    %v1133 = vunpack.c.h.b16 %v336
    %v1134 = vunpack.c.l.b16 %v337
    %v1135 = vunpack.c.h.b16 %v337
    %v1136 = vunpack.c.l.b16 %v338
    %v1137 = vunpack.c.h.b16 %v338
    %v1138 = vunpack.c.l.b16 %v339
    %v1139 = vunpack.c.h.b16 %v339
    %v1140 = vunpack.c.l.b16 %v340
    %v1141 = vunpack.c.h.b16 %v340
    %v1142 = vunpack.c.l.b16 %v341
    %v1143 = vunpack.c.h.b16 %v341
    %v1144 = vunpack.c.l.b16 %v342
    %v1145 = vunpack.c.h.b16 %v342
    %v1146 = vunpack.c.l.b16 %v343
    %v1147 = vunpack.c.h.b16 %v343
    %v1148 = vunpack.c.l.b16 %v344
    %v1149 = vunpack.c.h.b16 %v344
    %v1150 = vunpack.c.l.b16 %v345
    %v1151 = vunpack.c.h.b16 %v345
    %v1152 = vunpack.c.l.b16 %v346
    %v1153 = vunpack.c.h.b16 %v346
    %v1154 = vunpack.c.l.b16 %v347
    %v1155 = vunpack.c.h.b16 %v347
    %v1156 = vunpack.c.l.b16 %v348
    %v1157 = vunpack.c.h.b16 %v348
    %v1158 = vunpack.c.l.b16 %v349
    %v1159 = vunpack.c.h.b16 %v349
    %v1160 = vunpack.c.l.b16 %v350
    %v1161 = vunpack.c.h.b16 %v350
    %v1162 = vunpack.c.l.b16 %v351
    %v1163 = vunpack.c.h.b16 %v351
    %v1164 = vunpack.c.l.b16 %v352
    %v1165 = vunpack.c.h.b16 %v352
    %v1166 = vunpack.c.l.b16 %v353
    %v1167 = vunpack.c.h.b16 %v353
    %v1168 = vunpack.c.l.b16 %v354
    %v1169 = vunpack.c.h.b16 %v354
    %v1170 = vunpack.c.l.b16 %v355
    %v1171 = vunpack.c.h.b16 %v355
    %v1172 = vunpack.c.l.b16 %v356
    %v1173 = vunpack.c.h.b16 %v356
    %v1174 = vunpack.c.l.b16 %v357
    %v1175 = vunpack.c.h.b16 %v357
    %v1176 = vpack.c.b16 %v668, %v664
    %v1177 = vpack.c.b16 %v669, %v665
    %v1178 = vpack.c.b16 %v670, %v666
    %v1179 = vpack.c.b16 %v671, %v667
    %v1180 = vpack.c.b16 %v676, %v672
    %v1181 = vpack.c.b16 %v677, %v673
    %v1182 = vpack.c.b16 %v678, %v674
    %v1183 = vpack.c.b16 %v679, %v675
    %v1184 = vpack.c.b16 %v684, %v680
    %v1185 = vpack.c.b16 %v685, %v681
    %v1186 = vpack.c.b16 %v686, %v682
    %v1187 = vpack.c.b16 %v687, %v683
    %v1188 = vpack.c.b16 %v692, %v688
    %v1189 = vpack.c.b16 %v693, %v689
    %v1190 = vpack.c.b16 %v694, %v690
    %v1191 = vpack.c.b16 %v695, %v691
    %v1192 = vpack.c.b16 %v700, %v696
    %v1193 = vpack.c.b16 %v701, %v697
    %v1194 = vpack.c.b16 %v702, %v698
    %v1195 = vpack.c.b16 %v703, %v699
    %v1196 = vpack.c.b16 %v708, %v704
    %v1197 = vpack.c.b16 %v709, %v705
    %v1198 = vpack.c.b16 %v710, %v706
    %v1199 = vpack.c.b16 %v711, %v707
    %v1200 = vpack.c.b16 %v716, %v712
    %v1201 = vpack.c.b16 %v717, %v713
    %v1202 = vpack.c.b16 %v718, %v714
    %v1203 = vpack.c.b16 %v719, %v715
    %v1204 = vpack.c.b16 %v724, %v720
    %v1205 = vpack.c.b16 %v725, %v721
    %v1206 = vpack.c.b16 %v726, %v722
    %v1207 = vpack.c.b16 %v727, %v723
    %v1208 = vpack.c.b16 %v732, %v728
    %v1209 = vpack.c.b16 %v733, %v729
    %v1210 = vpack.c.b16 %v734, %v730
    %v1211 = vpack.c.b16 %v735, %v731
    %v1212 = vpack.c.b16 %v740, %v736
    %v1213 = vpack.c.b16 %v741, %v737
    %v1214 = vpack.c.b16 %v742, %v738
    %v1215 = vpack.c.b16 %v743, %v739
    %v1216 = vpack.c.b16 %v748, %v744
    %v1217 = vpack.c.b16 %v749, %v745
    %v1218 = vpack.c.b16 %v750, %v746
    %v1219 = vpack.c.b16 %v751, %v747
    %v1220 = vpack.c.b16 %v756, %v752
    %v1221 = vpack.c.b16 %v757, %v753
    %v1222 = vpack.c.b16 %v758, %v754
    %v1223 = vpack.c.b16 %v759, %v755
    %v1224 = vpack.c.b16 %v764, %v760
    %v1225 = vpack.c.b16 %v765, %v761
    %v1226 = vpack.c.b16 %v766, %v762
    %v1227 = vpack.c.b16 %v767, %v763
    %v1228 = vpack.c.b16 %v772, %v768
    %v1229 = vpack.c.b16 %v773, %v769
    %v1230 = vpack.c.b16 %v774, %v770
    %v1231 = vpack.c.b16 %v775, %v771
    %v1232 = vpack.c.b16 %v780, %v776
    %v1233 = vpack.c.b16 %v781, %v777
    %v1234 = vpack.c.b16 %v782, %v778
    %v1235 = vpack.c.b16 %v783, %v779
    %v1236 = vpack.c.b16 %v788, %v784
    %v1237 = vpack.c.b16 %v789, %v785
    %v1238 = vpack.c.b16 %v790, %v786
    %v1239 = vpack.c.b16 %v791, %v787
    %v1240 = vpack.c.b16 %v796, %v792
    %v1241 = vpack.c.b16 %v797, %v793
    %v1242 = vpack.c.b16 %v798, %v794
    %v1243 = vpack.c.b16 %v799, %v795
    %v1244 = vpack.c.b16 %v804, %v800
    %v1245 = vpack.c.b16 %v805, %v801
    %v1246 = vpack.c.b16 %v806, %v802
    %v1247 = vpack.c.b16 %v807, %v803
    %v1248 = vpack.c.b16 %v812, %v808
    %v1249 = vpack.c.b16 %v813, %v809
    %v1250 = vpack.c.b16 %v814, %v810
    %v1251 = vpack.c.b16 %v815, %v811
    %v1252 = vpack.c.b16 %v820, %v816
    %v1253 = vpack.c.b16 %v821, %v817
    %v1254 = vpack.c.b16 %v822, %v818
    %v1255 = vpack.c.b16 %v823, %v819
    %v1256 = vpack.c.b16 %v828, %v824
    %v1257 = vpack.c.b16 %v829, %v825
    %v1258 = vpack.c.b16 %v830, %v826
    %v1259 = vpack.c.b16 %v831, %v827
    %v1260 = vpack.c.b16 %v836, %v832
    %v1261 = vpack.c.b16 %v837, %v833
    %v1262 = vpack.c.b16 %v838, %v834
    %v1263 = vpack.c.b16 %v839, %v835
    %v1264 = vpack.c.b16 %v844, %v840
    %v1265 = vpack.c.b16 %v845, %v841
    %v1266 = vpack.c.b16 %v846, %v842
    %v1267 = vpack.c.b16 %v847, %v843
    %v1268 = vpack.c.b16 %v852, %v848
    %v1269 = vpack.c.b16 %v853, %v849
    %v1270 = vpack.c.b16 %v854, %v850
    %v1271 = vpack.c.b16 %v855, %v851
    %v1272 = vpack.c.b16 %v860, %v856
    %v1273 = vpack.c.b16 %v861, %v857
    %v1274 = vpack.c.b16 %v862, %v858
    %v1275 = vpack.c.b16 %v863, %v859
    %v1276 = vpack.c.b16 %v868, %v864
    %v1277 = vpack.c.b16 %v869, %v865
    %v1278 = vpack.c.b16 %v870, %v866
    %v1279 = vpack.c.b16 %v871, %v867
    %v1280 = vpack.c.b16 %v876, %v872
    %v1281 = vpack.c.b16 %v877, %v873
    %v1282 = vpack.c.b16 %v878, %v874
    %v1283 = vpack.c.b16 %v879, %v875
    %v1284 = vpack.c.b16 %v884, %v880
    %v1285 = vpack.c.b16 %v885, %v881
    %v1286 = vpack.c.b16 %v886, %v882
    %v1287 = vpack.c.b16 %v887, %v883
    %v1288 = vpack.c.b16 %v892, %v888
    %v1289 = vpack.c.b16 %v893, %v889
    %v1290 = vpack.c.b16 %v894, %v890
    %v1291 = vpack.c.b16 %v895, %v891
    %v1292 = vpack.c.b16 %v900, %v896
    %v1293 = vpack.c.b16 %v901, %v897
    %v1294 = vpack.c.b16 %v902, %v898
    %v1295 = vpack.c.b16 %v903, %v899
    %v1296 = vpack.c.b16 %v908, %v904
    %v1297 = vpack.c.b16 %v909, %v905
    %v1298 = vpack.c.b16 %v910, %v906
    %v1299 = vpack.c.b16 %v911, %v907
    %v1300 = vpack.c.b16 %v916, %v912
    %v1301 = vpack.c.b16 %v917, %v913
    %v1302 = vpack.c.b16 %v918, %v914
    %v1303 = vpack.c.b16 %v919, %v915
    %v1304 = vpack.c.b16 %v924, %v920
    %v1305 = vpack.c.b16 %v925, %v921
    %v1306 = vpack.c.b16 %v926, %v922
    %v1307 = vpack.c.b16 %v927, %v923
    %v1308 = vpack.c.b16 %v932, %v928
    %v1309 = vpack.c.b16 %v933, %v929
    %v1310 = vpack.c.b16 %v934, %v930
    %v1311 = vpack.c.b16 %v935, %v931
    %v1312 = vpack.c.b16 %v940, %v936
    %v1313 = vpack.c.b16 %v941, %v937
    %v1314 = vpack.c.b16 %v942, %v938
    %v1315 = vpack.c.b16 %v943, %v939
    %v1316 = vpack.c.b16 %v948, %v944
    %v1317 = vpack.c.b16 %v949, %v945
    %v1318 = vpack.c.b16 %v950, %v946
    %v1319 = vpack.c.b16 %v951, %v947
    %v1320 = vpack.c.b16 %v956, %v952
    %v1321 = vpack.c.b16 %v957, %v953
    %v1322 = vpack.c.b16 %v958, %v954
    %v1323 = vpack.c.b16 %v959, %v955
    %v1324 = vpack.c.b16 %v964, %v960
    %v1325 = vpack.c.b16 %v965, %v961
    %v1326 = vpack.c.b16 %v966, %v962
    %v1327 = vpack.c.b16 %v967, %v963
    %v1328 = vpack.c.b16 %v972, %v968
    %v1329 = vpack.c.b16 %v973, %v969
    %v1330 = vpack.c.b16 %v974, %v970
    %v1331 = vpack.c.b16 %v975, %v971
    %v1332 = vpack.c.b16 %v980, %v976
    %v1333 = vpack.c.b16 %v981, %v977
    %v1334 = vpack.c.b16 %v982, %v978
    %v1335 = vpack.c.b16 %v983, %v979
    %v1336 = vpack.c.b16 %v988, %v984
    %v1337 = vpack.c.b16 %v989, %v985
    %v1338 = vpack.c.b16 %v990, %v986
    %v1339 = vpack.c.b16 %v991, %v987
    %v1340 = vpack.c.b16 %v996, %v992
    %v1341 = vpack.c.b16 %v997, %v993
    %v1342 = vpack.c.b16 %v998, %v994
    %v1343 = vpack.c.b16 %v999, %v995
    %v1344 = vpack.c.b16 %v1004, %v1000
    %v1345 = vpack.c.b16 %v1005, %v1001
    %v1346 = vpack.c.b16 %v1006, %v1002
    %v1347 = vpack.c.b16 %v1007, %v1003
    %v1348 = vpack.c.b16 %v1012, %v1008
    %v1349 = vpack.c.b16 %v1013, %v1009
    %v1350 = vpack.c.b16 %v1014, %v1010
    %v1351 = vpack.c.b16 %v1015, %v1011
    %v1352 = vpack.c.b16 %v1020, %v1016
    %v1353 = vpack.c.b16 %v1021, %v1017
    %v1354 = vpack.c.b16 %v1022, %v1018
    %v1355 = vpack.c.b16 %v1023, %v1019
    %v1356 = vpack.c.b16 %v1028, %v1024
    %v1357 = vpack.c.b16 %v1029, %v1025
    %v1358 = vpack.c.b16 %v1030, %v1026
    %v1359 = vpack.c.b16 %v1031, %v1027
    %v1360 = vpack.c.b16 %v1036, %v1032
    %v1361 = vpack.c.b16 %v1037, %v1033
    %v1362 = vpack.c.b16 %v1038, %v1034
    %v1363 = vpack.c.b16 %v1039, %v1035
    %v1364 = vpack.c.b16 %v1044, %v1040
    %v1365 = vpack.c.b16 %v1045, %v1041
    %v1366 = vpack.c.b16 %v1046, %v1042
    %v1367 = vpack.c.b16 %v1047, %v1043
    %v1368 = vpack.c.b16 %v1052, %v1048
    %v1369 = vpack.c.b16 %v1053, %v1049
    %v1370 = vpack.c.b16 %v1054, %v1050
    %v1371 = vpack.c.b16 %v1055, %v1051
    %v1372 = vpack.c.b16 %v1060, %v1056
    %v1373 = vpack.c.b16 %v1061, %v1057
    %v1374 = vpack.c.b16 %v1062, %v1058
    %v1375 = vpack.c.b16 %v1063, %v1059
    %v1376 = vpack.c.b16 %v1068, %v1064
    %v1377 = vpack.c.b16 %v1069, %v1065
    %v1378 = vpack.c.b16 %v1070, %v1066
    %v1379 = vpack.c.b16 %v1071, %v1067
    %v1380 = vpack.c.b16 %v1076, %v1072
    %v1381 = vpack.c.b16 %v1077, %v1073
    %v1382 = vpack.c.b16 %v1078, %v1074
    %v1383 = vpack.c.b16 %v1079, %v1075
    %v1384 = vpack.c.b16 %v1084, %v1080
    %v1385 = vpack.c.b16 %v1085, %v1081
    %v1386 = vpack.c.b16 %v1086, %v1082
    %v1387 = vpack.c.b16 %v1087, %v1083
    %v1388 = vpack.c.b16 %v1092, %v1088
    %v1389 = vpack.c.b16 %v1093, %v1089
    %v1390 = vpack.c.b16 %v1094, %v1090
    %v1391 = vpack.c.b16 %v1095, %v1091
    %v1392 = vpack.c.b16 %v1100, %v1096
    %v1393 = vpack.c.b16 %v1101, %v1097
    %v1394 = vpack.c.b16 %v1102, %v1098
    %v1395 = vpack.c.b16 %v1103, %v1099
    %v1396 = vpack.c.b16 %v1108, %v1104
    %v1397 = vpack.c.b16 %v1109, %v1105
    %v1398 = vpack.c.b16 %v1110, %v1106
    %v1399 = vpack.c.b16 %v1111, %v1107
    %v1400 = vpack.c.b16 %v1116, %v1112
    %v1401 = vpack.c.b16 %v1117, %v1113
    %v1402 = vpack.c.b16 %v1118, %v1114
    %v1403 = vpack.c.b16 %v1119, %v1115
    %v1404 = vpack.c.b16 %v1124, %v1120
    %v1405 = vpack.c.b16 %v1125, %v1121
    %v1406 = vpack.c.b16 %v1126, %v1122
    %v1407 = vpack.c.b16 %v1127, %v1123
    %v1408 = vpack.c.b16 %v1132, %v1128
    %v1409 = vpack.c.b16 %v1133, %v1129
    %v1410 = vpack.c.b16 %v1134, %v1130
    %v1411 = vpack.c.b16 %v1135, %v1131
    %v1412 = vpack.c.b16 %v1140, %v1136
    %v1413 = vpack.c.b16 %v1141, %v1137
    %v1414 = vpack.c.b16 %v1142, %v1138
    %v1415 = vpack.c.b16 %v1143, %v1139
    %v1416 = vpack.c.b16 %v1148, %v1144
    %v1417 = vpack.c.b16 %v1149, %v1145
    %v1418 = vpack.c.b16 %v1150, %v1146
    %v1419 = vpack.c.b16 %v1151, %v1147
    %v1420 = vpack.c.b16 %v1156, %v1152
    %v1421 = vpack.c.b16 %v1157, %v1153
    %v1422 = vpack.c.b16 %v1158, %v1154
    %v1423 = vpack.c.b16 %v1159, %v1155
    %v1424 = vpack.c.b16 %v1164, %v1160
    %v1425 = vpack.c.b16 %v1165, %v1161
    %v1426 = vpack.c.b16 %v1166, %v1162
    %v1427 = vpack.c.b16 %v1167, %v1163
    %v1428 = vpack.c.b16 %v1172, %v1168
    %v1429 = vpack.c.b16 %v1173, %v1169
    %v1430 = vpack.c.b16 %v1174, %v1170
    %v1431 = vpack.c.b16 %v1175, %v1171
    %1688 = vmatprep.subr.bf16.mxu0 %v1205
    %1689 = vmatpush1.bf16.msra.mxu0 %v1204
    %1690 = vmatprep.subr.bf16.mxu0 %v1201
    %1691 = vmatpush1.bf16.msra.mxu0 %v1200
    %1692 = vmatprep.subr.bf16.mxu0 %v1197
    %1693 = vmatpush1.bf16.msra.mxu0 %v1196
    %1694 = vmatprep.subr.bf16.mxu0 %v1193
    %1695 = vmatpush1.bf16.msra.mxu0 %v1192
    %1696 = vmatprep.subr.bf16.mxu0 %v1189
    %1697 = vmatpush1.bf16.msra.mxu0 %v1188
    %1698 = vmatprep.subr.bf16.mxu0 %v1185
    %1699 = vmatpush1.bf16.msra.mxu0 %v1184
    %1700 = vmatprep.subr.bf16.mxu0 %v1181
    %1701 = vmatpush1.bf16.msra.mxu0 %v1180
    %1702 = vmatprep.subr.bf16.mxu0 %v1177
    %1703 = vmatpush1.bf16.msra.mxu0 %v1176
    %1704 = vmatprep.subr.bf16.mxu0 %v1237
    %1705 = vmatpush2.bf16.msra.mxu0 %v1236
    %1706 = vmatprep.subr.bf16.mxu0 %v1233
    %1707 = vmatpush2.bf16.msra.mxu0 %v1232
    %1708 = vmatprep.subr.bf16.mxu0 %v1229
    %1709 = vmatpush2.bf16.msra.mxu0 %v1228
    %1710 = vmatprep.subr.bf16.mxu0 %v1225
    %1711 = vmatpush2.bf16.msra.mxu0 %v1224
    %1712 = vmatprep.subr.bf16.mxu0 %v1221
    %1713 = vmatpush2.bf16.msra.mxu0 %v1220
    %1714 = vmatprep.subr.bf16.mxu0 %v1217
    %1715 = vmatpush2.bf16.msra.mxu0 %v1216
    %1716 = vmatprep.subr.bf16.mxu0 %v1213
    %1717 = vmatpush2.bf16.msra.mxu0 %v1212
    %1718 = vmatprep.subr.bf16.mxu0 %v1209
    %1719 = vmatpush2.bf16.msra.mxu0 %v1208
    %1720 = vmatprep.mubr.bf16.mxu0 %v393
    %1721 = vmatmul.mubr.bf16.gmra.mxu0 %v392
    %v1722 = vpop.f32.mrf.mxu0
    %v1723 = vadd.f32 %v363, %v1722
    %v1724 = vpop.f32.mrf.mxu0
    %v1725 = vadd.f32 %v367, %v1724
    %v1726 = vpop.f32.mrf.mxu0
    %v1727 = vpop.f32.mrf.mxu0
    %1728 = vdwg.mxu0
    %1729 = vmatprep.subr.bf16.mxu0 %v1269
    %1730 = vmatpush1.bf16.msra.mxu0 %v1268
    %1731 = vmatprep.subr.bf16.mxu0 %v1265
    %1732 = vmatpush1.bf16.msra.mxu0 %v1264
    %1733 = vmatprep.subr.bf16.mxu0 %v1261
    %1734 = vmatpush1.bf16.msra.mxu0 %v1260
    %1735 = vmatprep.subr.bf16.mxu0 %v1257
    %1736 = vmatpush1.bf16.msra.mxu0 %v1256
    %1737 = vmatprep.subr.bf16.mxu0 %v1253
    %1738 = vmatpush1.bf16.msra.mxu0 %v1252
    %1739 = vmatprep.subr.bf16.mxu0 %v1249
    %1740 = vmatpush1.bf16.msra.mxu0 %v1248
    %1741 = vmatprep.subr.bf16.mxu0 %v1245
    %1742 = vmatpush1.bf16.msra.mxu0 %v1244
    %1743 = vmatprep.subr.bf16.mxu0 %v1241
    %1744 = vmatpush1.bf16.msra.mxu0 %v1240
    %1745 = vmatprep.subr.bf16.mxu0 %v1301
    %1746 = vmatpush2.bf16.msra.mxu0 %v1300
    %1747 = vmatprep.subr.bf16.mxu0 %v1297
    %1748 = vmatpush2.bf16.msra.mxu0 %v1296
    %1749 = vmatprep.subr.bf16.mxu0 %v1293
    %1750 = vmatpush2.bf16.msra.mxu0 %v1292
    %1751 = vmatprep.subr.bf16.mxu0 %v1289
    %1752 = vmatpush2.bf16.msra.mxu0 %v1288
    %1753 = vmatprep.subr.bf16.mxu0 %v1285
    %1754 = vmatpush2.bf16.msra.mxu0 %v1284
    %1755 = vmatprep.subr.bf16.mxu0 %v1281
    %1756 = vmatpush2.bf16.msra.mxu0 %v1280
    %1757 = vmatprep.subr.bf16.mxu0 %v1277
    %1758 = vmatpush2.bf16.msra.mxu0 %v1276
    %1759 = vmatprep.subr.bf16.mxu0 %v1273
    %1760 = vmatpush2.bf16.msra.mxu0 %v1272
    %1761 = vmatprep.mubr.bf16.mxu0 %v395
    %1762 = vmatmul.mubr.bf16.gmra.mxu0 %v394
    %v1763 = vpop.f32.mrf.mxu0
    %v1764 = vadd.f32 %v1723, %v1763
    %v1765 = vpop.f32.mrf.mxu0
    %v1766 = vadd.f32 %v1725, %v1765
    %v1767 = vpop.f32.mrf.mxu0
    %v1768 = vpop.f32.mrf.mxu0
    %1769 = vdwg.mxu0
    %1770 = vmatprep.subr.bf16.mxu0 %v1333
    %1771 = vmatpush1.bf16.msra.mxu0 %v1332
    %1772 = vmatprep.subr.bf16.mxu0 %v1329
    %1773 = vmatpush1.bf16.msra.mxu0 %v1328
    %1774 = vmatprep.subr.bf16.mxu0 %v1325
    %1775 = vmatpush1.bf16.msra.mxu0 %v1324
    %1776 = vmatprep.subr.bf16.mxu0 %v1321
    %1777 = vmatpush1.bf16.msra.mxu0 %v1320
    %1778 = vmatprep.subr.bf16.mxu0 %v1317
    %1779 = vmatpush1.bf16.msra.mxu0 %v1316
    %1780 = vmatprep.subr.bf16.mxu0 %v1313
    %1781 = vmatpush1.bf16.msra.mxu0 %v1312
    %1782 = vmatprep.subr.bf16.mxu0 %v1309
    %1783 = vmatpush1.bf16.msra.mxu0 %v1308
    %1784 = vmatprep.subr.bf16.mxu0 %v1305
    %1785 = vmatpush1.bf16.msra.mxu0 %v1304
    %1786 = vmatprep.subr.bf16.mxu0 %v1365
    %1787 = vmatpush2.bf16.msra.mxu0 %v1364
    %1788 = vmatprep.subr.bf16.mxu0 %v1361
    %1789 = vmatpush2.bf16.msra.mxu0 %v1360
    %1790 = vmatprep.subr.bf16.mxu0 %v1357
    %1791 = vmatpush2.bf16.msra.mxu0 %v1356
    %1792 = vmatprep.subr.bf16.mxu0 %v1353
    %1793 = vmatpush2.bf16.msra.mxu0 %v1352
    %1794 = vmatprep.subr.bf16.mxu0 %v1349
    %1795 = vmatpush2.bf16.msra.mxu0 %v1348
    %1796 = vmatprep.subr.bf16.mxu0 %v1345
    %1797 = vmatpush2.bf16.msra.mxu0 %v1344
    %1798 = vmatprep.subr.bf16.mxu0 %v1341
    %1799 = vmatpush2.bf16.msra.mxu0 %v1340
    %1800 = vmatprep.subr.bf16.mxu0 %v1337
    %1801 = vmatpush2.bf16.msra.mxu0 %v1336
    %1802 = vmatprep.mubr.bf16.mxu0 %v397
    %1803 = vmatmul.mubr.bf16.gmra.mxu0 %v396
    %v1804 = vpop.f32.mrf.mxu0
    %v1805 = vadd.f32 %v1764, %v1804
    %v1806 = vpop.f32.mrf.mxu0
    %v1807 = vadd.f32 %v1766, %v1806
    %v1808 = vpop.f32.mrf.mxu0
    %v1809 = vpop.f32.mrf.mxu0
    %1810 = vdwg.mxu0
    %1811 = vmatprep.subr.bf16.mxu0 %v1397
    %1812 = vmatpush1.bf16.msra.mxu0 %v1396
    %1813 = vmatprep.subr.bf16.mxu0 %v1393
    %1814 = vmatpush1.bf16.msra.mxu0 %v1392
    %1815 = vmatprep.subr.bf16.mxu0 %v1389
    %1816 = vmatpush1.bf16.msra.mxu0 %v1388
    %1817 = vmatprep.subr.bf16.mxu0 %v1385
    %1818 = vmatpush1.bf16.msra.mxu0 %v1384
    %1819 = vmatprep.subr.bf16.mxu0 %v1381
    %1820 = vmatpush1.bf16.msra.mxu0 %v1380
    %1821 = vmatprep.subr.bf16.mxu0 %v1377
    %1822 = vmatpush1.bf16.msra.mxu0 %v1376
    %1823 = vmatprep.subr.bf16.mxu0 %v1373
    %1824 = vmatpush1.bf16.msra.mxu0 %v1372
    %1825 = vmatprep.subr.bf16.mxu0 %v1369
    %1826 = vmatpush1.bf16.msra.mxu0 %v1368
    %1827 = vmatprep.subr.bf16.mxu0 %v1429
    %1828 = vmatpush2.bf16.msra.mxu0 %v1428
    %1829 = vmatprep.subr.bf16.mxu0 %v1425
    %1830 = vmatpush2.bf16.msra.mxu0 %v1424
    %1831 = vmatprep.subr.bf16.mxu0 %v1421
    %1832 = vmatpush2.bf16.msra.mxu0 %v1420
    %1833 = vmatprep.subr.bf16.mxu0 %v1417
    %1834 = vmatpush2.bf16.msra.mxu0 %v1416
    %1835 = vmatprep.subr.bf16.mxu0 %v1413
    %1836 = vmatpush2.bf16.msra.mxu0 %v1412
    %1837 = vmatprep.subr.bf16.mxu0 %v1409
    %1838 = vmatpush2.bf16.msra.mxu0 %v1408
    %1839 = vmatprep.subr.bf16.mxu0 %v1405
    %1840 = vmatpush2.bf16.msra.mxu0 %v1404
    %1841 = vmatprep.subr.bf16.mxu0 %v1401
    %1842 = vmatpush2.bf16.msra.mxu0 %v1400
    %1843 = vmatprep.mubr.bf16.mxu0 %v399
    %1844 = vmatmul.mubr.bf16.gmra.mxu0 %v398
    %v1845 = vpop.f32.mrf.mxu0
    %v1846 = vadd.f32 %v1805, %v1845
    %v1847 = vpop.f32.mrf.mxu0
    %v1848 = vadd.f32 %v1807, %v1847
    %v1849 = vpop.f32.mrf.mxu0
    %v1850 = vpop.f32.mrf.mxu0
    %1851 = vdwg.mxu0
    %1852 = vmatprep.subr.bf16.mxu0 %v1207
    %1853 = vmatpush1.bf16.msra.mxu0 %v1206
    %1854 = vmatprep.subr.bf16.mxu0 %v1203
    %1855 = vmatpush1.bf16.msra.mxu0 %v1202
    %1856 = vmatprep.subr.bf16.mxu0 %v1199
    %1857 = vmatpush1.bf16.msra.mxu0 %v1198
    %1858 = vmatprep.subr.bf16.mxu0 %v1195
    %1859 = vmatpush1.bf16.msra.mxu0 %v1194
    %1860 = vmatprep.subr.bf16.mxu0 %v1191
    %1861 = vmatpush1.bf16.msra.mxu0 %v1190
    %1862 = vmatprep.subr.bf16.mxu0 %v1187
    %1863 = vmatpush1.bf16.msra.mxu0 %v1186
    %1864 = vmatprep.subr.bf16.mxu0 %v1183
    %1865 = vmatpush1.bf16.msra.mxu0 %v1182
    %1866 = vmatprep.subr.bf16.mxu0 %v1179
    %1867 = vmatpush1.bf16.msra.mxu0 %v1178
    %1868 = vmatprep.subr.bf16.mxu0 %v1239
    %1869 = vmatpush2.bf16.msra.mxu0 %v1238
    %1870 = vmatprep.subr.bf16.mxu0 %v1235
    %1871 = vmatpush2.bf16.msra.mxu0 %v1234
    %1872 = vmatprep.subr.bf16.mxu0 %v1231
    %1873 = vmatpush2.bf16.msra.mxu0 %v1230
    %1874 = vmatprep.subr.bf16.mxu0 %v1227
    %1875 = vmatpush2.bf16.msra.mxu0 %v1226
    %1876 = vmatprep.subr.bf16.mxu0 %v1223
    %1877 = vmatpush2.bf16.msra.mxu0 %v1222
    %1878 = vmatprep.subr.bf16.mxu0 %v1219
    %1879 = vmatpush2.bf16.msra.mxu0 %v1218
    %1880 = vmatprep.subr.bf16.mxu0 %v1215
    %1881 = vmatpush2.bf16.msra.mxu0 %v1214
    %1882 = vmatprep.subr.bf16.mxu0 %v1211
    %1883 = vmatpush2.bf16.msra.mxu0 %v1210
    %1884 = vmatprep.mubr.bf16.mxu0 %v393
    %1885 = vmatmul.mubr.bf16.gmra.mxu0 %v392
    %v1886 = vpop.f32.mrf.mxu0
    %v1887 = vadd.f32 %v371, %v1886
    %v1888 = vpop.f32.mrf.mxu0
    %v1889 = vadd.f32 %v375, %v1888
    %v1890 = vpop.f32.mrf.mxu0
    %v1891 = vpop.f32.mrf.mxu0
    %1892 = vdwg.mxu0
    %1893 = vmatprep.subr.bf16.mxu0 %v1271
    %1894 = vmatpush1.bf16.msra.mxu0 %v1270
    %1895 = vmatprep.subr.bf16.mxu0 %v1267
    %1896 = vmatpush1.bf16.msra.mxu0 %v1266
    %1897 = vmatprep.subr.bf16.mxu0 %v1263
    %1898 = vmatpush1.bf16.msra.mxu0 %v1262
    %1899 = vmatprep.subr.bf16.mxu0 %v1259
    %1900 = vmatpush1.bf16.msra.mxu0 %v1258
    %1901 = vmatprep.subr.bf16.mxu0 %v1255
    %1902 = vmatpush1.bf16.msra.mxu0 %v1254
    %1903 = vmatprep.subr.bf16.mxu0 %v1251
    %1904 = vmatpush1.bf16.msra.mxu0 %v1250
    %1905 = vmatprep.subr.bf16.mxu0 %v1247
    %1906 = vmatpush1.bf16.msra.mxu0 %v1246
    %1907 = vmatprep.subr.bf16.mxu0 %v1243
    %1908 = vmatpush1.bf16.msra.mxu0 %v1242
    %1909 = vmatprep.subr.bf16.mxu0 %v1303
    %1910 = vmatpush2.bf16.msra.mxu0 %v1302
    %1911 = vmatprep.subr.bf16.mxu0 %v1299
    %1912 = vmatpush2.bf16.msra.mxu0 %v1298
    %1913 = vmatprep.subr.bf16.mxu0 %v1295
    %1914 = vmatpush2.bf16.msra.mxu0 %v1294
    %1915 = vmatprep.subr.bf16.mxu0 %v1291
    %1916 = vmatpush2.bf16.msra.mxu0 %v1290
    %1917 = vmatprep.subr.bf16.mxu0 %v1287
    %1918 = vmatpush2.bf16.msra.mxu0 %v1286
    %1919 = vmatprep.subr.bf16.mxu0 %v1283
    %1920 = vmatpush2.bf16.msra.mxu0 %v1282
    %1921 = vmatprep.subr.bf16.mxu0 %v1279
    %1922 = vmatpush2.bf16.msra.mxu0 %v1278
    %1923 = vmatprep.subr.bf16.mxu0 %v1275
    %1924 = vmatpush2.bf16.msra.mxu0 %v1274
    %1925 = vmatprep.mubr.bf16.mxu0 %v395
    %1926 = vmatmul.mubr.bf16.gmra.mxu0 %v394
    %v1927 = vpop.f32.mrf.mxu0
    %v1928 = vadd.f32 %v1887, %v1927
    %v1929 = vpop.f32.mrf.mxu0
    %v1930 = vadd.f32 %v1889, %v1929
    %v1931 = vpop.f32.mrf.mxu0
    %v1932 = vpop.f32.mrf.mxu0
    %1933 = vdwg.mxu0
    %1934 = vmatprep.subr.bf16.mxu0 %v1335
    %1935 = vmatpush1.bf16.msra.mxu0 %v1334
    %1936 = vmatprep.subr.bf16.mxu0 %v1331
    %1937 = vmatpush1.bf16.msra.mxu0 %v1330
    %1938 = vmatprep.subr.bf16.mxu0 %v1327
    %1939 = vmatpush1.bf16.msra.mxu0 %v1326
    %1940 = vmatprep.subr.bf16.mxu0 %v1323
    %1941 = vmatpush1.bf16.msra.mxu0 %v1322
    %1942 = vmatprep.subr.bf16.mxu0 %v1319
    %1943 = vmatpush1.bf16.msra.mxu0 %v1318
    %1944 = vmatprep.subr.bf16.mxu0 %v1315
    %1945 = vmatpush1.bf16.msra.mxu0 %v1314
    %1946 = vmatprep.subr.bf16.mxu0 %v1311
    %1947 = vmatpush1.bf16.msra.mxu0 %v1310
    %1948 = vmatprep.subr.bf16.mxu0 %v1307
    %1949 = vmatpush1.bf16.msra.mxu0 %v1306
    %1950 = vmatprep.subr.bf16.mxu0 %v1367
    %1951 = vmatpush2.bf16.msra.mxu0 %v1366
    %1952 = vmatprep.subr.bf16.mxu0 %v1363
    %1953 = vmatpush2.bf16.msra.mxu0 %v1362
    %1954 = vmatprep.subr.bf16.mxu0 %v1359
    %1955 = vmatpush2.bf16.msra.mxu0 %v1358
    %1956 = vmatprep.subr.bf16.mxu0 %v1355
    %1957 = vmatpush2.bf16.msra.mxu0 %v1354
    %1958 = vmatprep.subr.bf16.mxu0 %v1351
    %1959 = vmatpush2.bf16.msra.mxu0 %v1350
    %1960 = vmatprep.subr.bf16.mxu0 %v1347
    %1961 = vmatpush2.bf16.msra.mxu0 %v1346
    %1962 = vmatprep.subr.bf16.mxu0 %v1343
    %1963 = vmatpush2.bf16.msra.mxu0 %v1342
    %1964 = vmatprep.subr.bf16.mxu0 %v1339
    %1965 = vmatpush2.bf16.msra.mxu0 %v1338
    %1966 = vmatprep.mubr.bf16.mxu0 %v397
    %1967 = vmatmul.mubr.bf16.gmra.mxu0 %v396
    %v1968 = vpop.f32.mrf.mxu0
    %v1969 = vadd.f32 %v1928, %v1968
    %v1970 = vpop.f32.mrf.mxu0
    %v1971 = vadd.f32 %v1930, %v1970
    %v1972 = vpop.f32.mrf.mxu0
    %v1973 = vpop.f32.mrf.mxu0
    %1974 = vdwg.mxu0
    %1975 = vmatprep.subr.bf16.mxu0 %v1399
    %1976 = vmatpush1.bf16.msra.mxu0 %v1398
    %1977 = vmatprep.subr.bf16.mxu0 %v1395
    %1978 = vmatpush1.bf16.msra.mxu0 %v1394
    %1979 = vmatprep.subr.bf16.mxu0 %v1391
    %1980 = vmatpush1.bf16.msra.mxu0 %v1390
    %1981 = vmatprep.subr.bf16.mxu0 %v1387
    %1982 = vmatpush1.bf16.msra.mxu0 %v1386
    %1983 = vmatprep.subr.bf16.mxu0 %v1383
    %1984 = vmatpush1.bf16.msra.mxu0 %v1382
    %1985 = vmatprep.subr.bf16.mxu0 %v1379
    %1986 = vmatpush1.bf16.msra.mxu0 %v1378
    %1987 = vmatprep.subr.bf16.mxu0 %v1375
    %1988 = vmatpush1.bf16.msra.mxu0 %v1374
    %1989 = vmatprep.subr.bf16.mxu0 %v1371
    %1990 = vmatpush1.bf16.msra.mxu0 %v1370
    %1991 = vmatprep.subr.bf16.mxu0 %v1431
    %1992 = vmatpush2.bf16.msra.mxu0 %v1430
    %1993 = vmatprep.subr.bf16.mxu0 %v1427
    %1994 = vmatpush2.bf16.msra.mxu0 %v1426
    %1995 = vmatprep.subr.bf16.mxu0 %v1423
    %1996 = vmatpush2.bf16.msra.mxu0 %v1422
    %1997 = vmatprep.subr.bf16.mxu0 %v1419
    %1998 = vmatpush2.bf16.msra.mxu0 %v1418
    %1999 = vmatprep.subr.bf16.mxu0 %v1415
    %2000 = vmatpush2.bf16.msra.mxu0 %v1414
    %2001 = vmatprep.subr.bf16.mxu0 %v1411
    %2002 = vmatpush2.bf16.msra.mxu0 %v1410
    %2003 = vmatprep.subr.bf16.mxu0 %v1407
    %2004 = vmatpush2.bf16.msra.mxu0 %v1406
    %2005 = vmatprep.subr.bf16.mxu0 %v1403
    %2006 = vmatpush2.bf16.msra.mxu0 %v1402
    %2007 = vmatprep.mubr.bf16.mxu0 %v399
    %2008 = vmatmul.mubr.bf16.gmra.mxu0 %v398
    %v2009 = vpop.f32.mrf.mxu0
    %v2010 = vadd.f32 %v1969, %v2009
    %v2011 = vpop.f32.mrf.mxu0
    %v2012 = vadd.f32 %v1971, %v2011
    %v2013 = vpop.f32.mrf.mxu0
    %v2014 = vpop.f32.mrf.mxu0
    %2015 = vdwg.mxu0
    %v2016 = vmax.f32 %v1846, 0.0
    %v2017 = vmax.f32 %v1848, 0.0
    %v2018 = vmax.f32 %v2010, 0.0
    %v2019 = vmax.f32 %v2012, 0.0
    %v2020 = vpack.c.bf16 %v2016, %v2016
    %v2021 = vpack.c.bf16 %v2017, %v2017
    %v2022 = vpack.c.bf16 %v2018, %v2018
    %v2023 = vpack.c.bf16 %v2019, %v2019
    %v2024 = vld [vmem:[#allocation4] sm:$0xff]
    %v2025 = vld [vmem:[#allocation4 + $0x8] sm:$0xff]
    %v2026 = vld [vmem:[#allocation4 + $0x10] sm:$0xff]
    %v2027 = vld [vmem:[#allocation4 + $0x18] sm:$0xff]
    %v2028 = vld [vmem:[#allocation4 + $0x20] sm:$0xff]
    %v2029 = vld [vmem:[#allocation4 + $0x28] sm:$0xff]
    %v2030 = vld [vmem:[#allocation4 + $0x30] sm:$0xff]
    %v2031 = vld [vmem:[#allocation4 + $0x38] sm:$0xff]
    %v2032 = vld [vmem:[#allocation4 + $0x40] sm:$0xff]
    %v2033 = vld [vmem:[#allocation4 + $0x48] sm:$0xff]
    %v2034 = vld [vmem:[#allocation4 + $0x50] sm:$0xff]
    %v2035 = vld [vmem:[#allocation4 + $0x58] sm:$0xff]
    %v2036 = vld [vmem:[#allocation4 + $0x60] sm:$0xff]
    %v2037 = vld [vmem:[#allocation4 + $0x68] sm:$0xff]
    %v2038 = vld [vmem:[#allocation4 + $0x70] sm:$0xff]
    %v2039 = vld [vmem:[#allocation4 + $0x78] sm:$0xff]
    %v2040 = vld [vmem:[#allocation4 + $0x80] sm:$0xff]
    %v2041 = vld [vmem:[#allocation4 + $0x88] sm:$0xff]
    %v2042 = vld [vmem:[#allocation4 + $0x90] sm:$0xff]
    %v2043 = vld [vmem:[#allocation4 + $0x98] sm:$0xff]
    %v2044 = vld [vmem:[#allocation4 + $0xa0] sm:$0xff]
    %v2045 = vld [vmem:[#allocation4 + $0xa8] sm:$0xff]
    %v2046 = vld [vmem:[#allocation4 + $0xb0] sm:$0xff]
    %v2047 = vld [vmem:[#allocation4 + $0xb8] sm:$0xff]
    %v2048 = vld [vmem:[#allocation4 + $0xc0] sm:$0xff]
    %v2049 = vld [vmem:[#allocation4 + $0xc8] sm:$0xff]
    %v2050 = vld [vmem:[#allocation4 + $0xd0] sm:$0xff]
    %v2051 = vld [vmem:[#allocation4 + $0xd8] sm:$0xff]
    %v2052 = vld [vmem:[#allocation4 + $0xe0] sm:$0xff]
    %v2053 = vld [vmem:[#allocation4 + $0xe8] sm:$0xff]
    %v2054 = vld [vmem:[#allocation4 + $0xf0] sm:$0xff]
    %v2055 = vld [vmem:[#allocation4 + $0xf8] sm:$0xff]
    %v2056 = vld [vmem:[#allocation4 + $0x100] sm:$0xff]
    %v2057 = vld [vmem:[#allocation4 + $0x108] sm:$0xff]
    %v2058 = vld [vmem:[#allocation4 + $0x110] sm:$0xff]
    %v2059 = vld [vmem:[#allocation4 + $0x118] sm:$0xff]
    %v2060 = vld [vmem:[#allocation4 + $0x120] sm:$0xff]
    %v2061 = vld [vmem:[#allocation4 + $0x128] sm:$0xff]
    %v2062 = vld [vmem:[#allocation4 + $0x130] sm:$0xff]
    %v2063 = vld [vmem:[#allocation4 + $0x138] sm:$0xff]
    %v2064 = vld [vmem:[#allocation4 + $0x140] sm:$0xff]
    %v2065 = vld [vmem:[#allocation4 + $0x148] sm:$0xff]
    %v2066 = vld [vmem:[#allocation4 + $0x150] sm:$0xff]
    %v2067 = vld [vmem:[#allocation4 + $0x158] sm:$0xff]
    %v2068 = vld [vmem:[#allocation4 + $0x160] sm:$0xff]
    %v2069 = vld [vmem:[#allocation4 + $0x168] sm:$0xff]
    %v2070 = vld [vmem:[#allocation4 + $0x170] sm:$0xff]
    %v2071 = vld [vmem:[#allocation4 + $0x178] sm:$0xff]
    %v2072 = vld [vmem:[#allocation4 + $0x180] sm:$0xff]
    %v2073 = vld [vmem:[#allocation4 + $0x188] sm:$0xff]
    %v2074 = vld [vmem:[#allocation4 + $0x190] sm:$0xff]
    %v2075 = vld [vmem:[#allocation4 + $0x198] sm:$0xff]
    %v2076 = vld [vmem:[#allocation4 + $0x1a0] sm:$0xff]
    %v2077 = vld [vmem:[#allocation4 + $0x1a8] sm:$0xff]
    %v2078 = vld [vmem:[#allocation4 + $0x1b0] sm:$0xff]
    %v2079 = vld [vmem:[#allocation4 + $0x1b8] sm:$0xff]
    %v2080 = vld [vmem:[#allocation4 + $0x1c0] sm:$0xff]
    %v2081 = vld [vmem:[#allocation4 + $0x1c8] sm:$0xff]
    %v2082 = vld [vmem:[#allocation4 + $0x1d0] sm:$0xff]
    %v2083 = vld [vmem:[#allocation4 + $0x1d8] sm:$0xff]
    %v2084 = vld [vmem:[#allocation4 + $0x1e0] sm:$0xff]
    %v2085 = vld [vmem:[#allocation4 + $0x1e8] sm:$0xff]
    %v2086 = vld [vmem:[#allocation4 + $0x1f0] sm:$0xff]
    %v2087 = vld [vmem:[#allocation4 + $0x1f8] sm:$0xff]
    %v2088 = vld [vmem:[%s4] sm:$0x3]
    %v2090 = vlaneseq
    %v2091 = vshrl.u32 %v2090, 7
    %v2092 = vsub.s32 0, %v2091
    %v2093 = vrot.slane %v2088, %v2092
    %v2094 = vlaneseq
    %v2095 = vshrl.u32 %v2094, 7
    %v2096 = vsub.s32 1, %v2095
    %v2097 = vrot.slane %v2088, %v2096
    %v2164 = vunpack.c.l.b16 %v2024
    %v2165 = vunpack.c.h.b16 %v2024
    %v2166 = vunpack.c.l.b16 %v2025
    %v2167 = vunpack.c.h.b16 %v2025
    %v2168 = vunpack.c.l.b16 %v2026
    %v2169 = vunpack.c.h.b16 %v2026
    %v2170 = vunpack.c.l.b16 %v2027
    %v2171 = vunpack.c.h.b16 %v2027
    %v2172 = vunpack.c.l.b16 %v2028
    %v2173 = vunpack.c.h.b16 %v2028
    %v2174 = vunpack.c.l.b16 %v2029
    %v2175 = vunpack.c.h.b16 %v2029
    %v2176 = vunpack.c.l.b16 %v2030
    %v2177 = vunpack.c.h.b16 %v2030
    %v2178 = vunpack.c.l.b16 %v2031
    %v2179 = vunpack.c.h.b16 %v2031
    %v2180 = vunpack.c.l.b16 %v2032
    %v2181 = vunpack.c.h.b16 %v2032
    %v2182 = vunpack.c.l.b16 %v2033
    %v2183 = vunpack.c.h.b16 %v2033
    %v2184 = vunpack.c.l.b16 %v2034
    %v2185 = vunpack.c.h.b16 %v2034
    %v2186 = vunpack.c.l.b16 %v2035
    %v2187 = vunpack.c.h.b16 %v2035
    %v2188 = vunpack.c.l.b16 %v2036
    %v2189 = vunpack.c.h.b16 %v2036
    %v2190 = vunpack.c.l.b16 %v2037
    %v2191 = vunpack.c.h.b16 %v2037
    %v2192 = vunpack.c.l.b16 %v2038
    %v2193 = vunpack.c.h.b16 %v2038
    %v2194 = vunpack.c.l.b16 %v2039
    %v2195 = vunpack.c.h.b16 %v2039
    %v2196 = vunpack.c.l.b16 %v2040
    %v2197 = vunpack.c.h.b16 %v2040
    %v2198 = vunpack.c.l.b16 %v2041
    %v2199 = vunpack.c.h.b16 %v2041
    %v2200 = vunpack.c.l.b16 %v2042
    %v2201 = vunpack.c.h.b16 %v2042
    %v2202 = vunpack.c.l.b16 %v2043
    %v2203 = vunpack.c.h.b16 %v2043
    %v2204 = vunpack.c.l.b16 %v2044
    %v2205 = vunpack.c.h.b16 %v2044
    %v2206 = vunpack.c.l.b16 %v2045
    %v2207 = vunpack.c.h.b16 %v2045
    %v2208 = vunpack.c.l.b16 %v2046
    %v2209 = vunpack.c.h.b16 %v2046
    %v2210 = vunpack.c.l.b16 %v2047
    %v2211 = vunpack.c.h.b16 %v2047
    %v2212 = vunpack.c.l.b16 %v2048
    %v2213 = vunpack.c.h.b16 %v2048
    %v2214 = vunpack.c.l.b16 %v2049
    %v2215 = vunpack.c.h.b16 %v2049
    %v2216 = vunpack.c.l.b16 %v2050
    %v2217 = vunpack.c.h.b16 %v2050
    %v2218 = vunpack.c.l.b16 %v2051
    %v2219 = vunpack.c.h.b16 %v2051
    %v2220 = vunpack.c.l.b16 %v2052
    %v2221 = vunpack.c.h.b16 %v2052
    %v2222 = vunpack.c.l.b16 %v2053
    %v2223 = vunpack.c.h.b16 %v2053
    %v2224 = vunpack.c.l.b16 %v2054
    %v2225 = vunpack.c.h.b16 %v2054
    %v2226 = vunpack.c.l.b16 %v2055
    %v2227 = vunpack.c.h.b16 %v2055
    %v2228 = vunpack.c.l.b16 %v2056
    %v2229 = vunpack.c.h.b16 %v2056
    %v2230 = vunpack.c.l.b16 %v2057
    %v2231 = vunpack.c.h.b16 %v2057
    %v2232 = vunpack.c.l.b16 %v2058
    %v2233 = vunpack.c.h.b16 %v2058
    %v2234 = vunpack.c.l.b16 %v2059
    %v2235 = vunpack.c.h.b16 %v2059
    %v2236 = vunpack.c.l.b16 %v2060
    %v2237 = vunpack.c.h.b16 %v2060
    %v2238 = vunpack.c.l.b16 %v2061
    %v2239 = vunpack.c.h.b16 %v2061
    %v2240 = vunpack.c.l.b16 %v2062
    %v2241 = vunpack.c.h.b16 %v2062
    %v2242 = vunpack.c.l.b16 %v2063
    %v2243 = vunpack.c.h.b16 %v2063
    %v2244 = vunpack.c.l.b16 %v2064
    %v2245 = vunpack.c.h.b16 %v2064
    %v2246 = vunpack.c.l.b16 %v2065
    %v2247 = vunpack.c.h.b16 %v2065
    %v2248 = vunpack.c.l.b16 %v2066
    %v2249 = vunpack.c.h.b16 %v2066
    %v2250 = vunpack.c.l.b16 %v2067
    %v2251 = vunpack.c.h.b16 %v2067
    %v2252 = vunpack.c.l.b16 %v2068
    %v2253 = vunpack.c.h.b16 %v2068
    %v2254 = vunpack.c.l.b16 %v2069
    %v2255 = vunpack.c.h.b16 %v2069
    %v2256 = vunpack.c.l.b16 %v2070
    %v2257 = vunpack.c.h.b16 %v2070
    %v2258 = vunpack.c.l.b16 %v2071
    %v2259 = vunpack.c.h.b16 %v2071
    %v2260 = vunpack.c.l.b16 %v2072
    %v2261 = vunpack.c.h.b16 %v2072
    %v2262 = vunpack.c.l.b16 %v2073
    %v2263 = vunpack.c.h.b16 %v2073
    %v2264 = vunpack.c.l.b16 %v2074
    %v2265 = vunpack.c.h.b16 %v2074
    %v2266 = vunpack.c.l.b16 %v2075
    %v2267 = vunpack.c.h.b16 %v2075
    %v2268 = vunpack.c.l.b16 %v2076
    %v2269 = vunpack.c.h.b16 %v2076
    %v2270 = vunpack.c.l.b16 %v2077
    %v2271 = vunpack.c.h.b16 %v2077
    %v2272 = vunpack.c.l.b16 %v2078
    %v2273 = vunpack.c.h.b16 %v2078
    %v2274 = vunpack.c.l.b16 %v2079
    %v2275 = vunpack.c.h.b16 %v2079
    %v2276 = vunpack.c.l.b16 %v2080
    %v2277 = vunpack.c.h.b16 %v2080
    %v2278 = vunpack.c.l.b16 %v2081
    %v2279 = vunpack.c.h.b16 %v2081
    %v2280 = vunpack.c.l.b16 %v2082
    %v2281 = vunpack.c.h.b16 %v2082
    %v2282 = vunpack.c.l.b16 %v2083
    %v2283 = vunpack.c.h.b16 %v2083
    %v2284 = vunpack.c.l.b16 %v2084
    %v2285 = vunpack.c.h.b16 %v2084
    %v2286 = vunpack.c.l.b16 %v2085
    %v2287 = vunpack.c.h.b16 %v2085
    %v2288 = vunpack.c.l.b16 %v2086
    %v2289 = vunpack.c.h.b16 %v2086
    %v2290 = vunpack.c.l.b16 %v2087
    %v2291 = vunpack.c.h.b16 %v2087
    %v2292 = vpack.c.b16 %v2166, %v2164
    %v2293 = vpack.c.b16 %v2167, %v2165
    %v2294 = vpack.c.b16 %v2170, %v2168
    %v2295 = vpack.c.b16 %v2171, %v2169
    %v2296 = vpack.c.b16 %v2174, %v2172
    %v2297 = vpack.c.b16 %v2175, %v2173
    %v2298 = vpack.c.b16 %v2178, %v2176
    %v2299 = vpack.c.b16 %v2179, %v2177
    %v2300 = vpack.c.b16 %v2182, %v2180
    %v2301 = vpack.c.b16 %v2183, %v2181
    %v2302 = vpack.c.b16 %v2186, %v2184
    %v2303 = vpack.c.b16 %v2187, %v2185
    %v2304 = vpack.c.b16 %v2190, %v2188
    %v2305 = vpack.c.b16 %v2191, %v2189
    %v2306 = vpack.c.b16 %v2194, %v2192
    %v2307 = vpack.c.b16 %v2195, %v2193
    %v2308 = vpack.c.b16 %v2198, %v2196
    %v2309 = vpack.c.b16 %v2199, %v2197
    %v2310 = vpack.c.b16 %v2202, %v2200
    %v2311 = vpack.c.b16 %v2203, %v2201
    %v2312 = vpack.c.b16 %v2206, %v2204
    %v2313 = vpack.c.b16 %v2207, %v2205
    %v2314 = vpack.c.b16 %v2210, %v2208
    %v2315 = vpack.c.b16 %v2211, %v2209
    %v2316 = vpack.c.b16 %v2214, %v2212
    %v2317 = vpack.c.b16 %v2215, %v2213
    %v2318 = vpack.c.b16 %v2218, %v2216
    %v2319 = vpack.c.b16 %v2219, %v2217
    %v2320 = vpack.c.b16 %v2222, %v2220
    %v2321 = vpack.c.b16 %v2223, %v2221
    %v2322 = vpack.c.b16 %v2226, %v2224
    %v2323 = vpack.c.b16 %v2227, %v2225
    %v2324 = vpack.c.b16 %v2230, %v2228
    %v2325 = vpack.c.b16 %v2231, %v2229
    %v2326 = vpack.c.b16 %v2234, %v2232
    %v2327 = vpack.c.b16 %v2235, %v2233
    %v2328 = vpack.c.b16 %v2238, %v2236
    %v2329 = vpack.c.b16 %v2239, %v2237
    %v2330 = vpack.c.b16 %v2242, %v2240
    %v2331 = vpack.c.b16 %v2243, %v2241
    %v2332 = vpack.c.b16 %v2246, %v2244
    %v2333 = vpack.c.b16 %v2247, %v2245
    %v2334 = vpack.c.b16 %v2250, %v2248
    %v2335 = vpack.c.b16 %v2251, %v2249
    %v2336 = vpack.c.b16 %v2254, %v2252
    %v2337 = vpack.c.b16 %v2255, %v2253
    %v2338 = vpack.c.b16 %v2258, %v2256
    %v2339 = vpack.c.b16 %v2259, %v2257
    %v2340 = vpack.c.b16 %v2262, %v2260
    %v2341 = vpack.c.b16 %v2263, %v2261
    %v2342 = vpack.c.b16 %v2266, %v2264
    %v2343 = vpack.c.b16 %v2267, %v2265
    %v2344 = vpack.c.b16 %v2270, %v2268
    %v2345 = vpack.c.b16 %v2271, %v2269
    %v2346 = vpack.c.b16 %v2274, %v2272
    %v2347 = vpack.c.b16 %v2275, %v2273
    %v2348 = vpack.c.b16 %v2278, %v2276
    %v2349 = vpack.c.b16 %v2279, %v2277
    %v2350 = vpack.c.b16 %v2282, %v2280
    %v2351 = vpack.c.b16 %v2283, %v2281
    %v2352 = vpack.c.b16 %v2286, %v2284
    %v2353 = vpack.c.b16 %v2287, %v2285
    %v2354 = vpack.c.b16 %v2290, %v2288
    %v2355 = vpack.c.b16 %v2291, %v2289
    %2420 = vmatprep.subr.bf16.mxu0 %v2307
    %2421 = vmatpush1.bf16.msra.mxu0 %v2306
    %2422 = vmatprep.subr.bf16.mxu0 %v2305
    %2423 = vmatpush1.bf16.msra.mxu0 %v2304
    %2424 = vmatprep.subr.bf16.mxu0 %v2303
    %2425 = vmatpush1.bf16.msra.mxu0 %v2302
    %2426 = vmatprep.subr.bf16.mxu0 %v2301
    %2427 = vmatpush1.bf16.msra.mxu0 %v2300
    %2428 = vmatprep.subr.bf16.mxu0 %v2299
    %2429 = vmatpush1.bf16.msra.mxu0 %v2298
    %2430 = vmatprep.subr.bf16.mxu0 %v2297
    %2431 = vmatpush1.bf16.msra.mxu0 %v2296
    %2432 = vmatprep.subr.bf16.mxu0 %v2295
    %2433 = vmatpush1.bf16.msra.mxu0 %v2294
    %2434 = vmatprep.subr.bf16.mxu0 %v2293
    %2435 = vmatpush1.bf16.msra.mxu0 %v2292
    %2436 = vmatprep.subr.bf16.mxu0 %v2323
    %2437 = vmatpush2.bf16.msra.mxu0 %v2322
    %2438 = vmatprep.subr.bf16.mxu0 %v2321
    %2439 = vmatpush2.bf16.msra.mxu0 %v2320
    %2440 = vmatprep.subr.bf16.mxu0 %v2319
    %2441 = vmatpush2.bf16.msra.mxu0 %v2318
    %2442 = vmatprep.subr.bf16.mxu0 %v2317
    %2443 = vmatpush2.bf16.msra.mxu0 %v2316
    %2444 = vmatprep.subr.bf16.mxu0 %v2315
    %2445 = vmatpush2.bf16.msra.mxu0 %v2314
    %2446 = vmatprep.subr.bf16.mxu0 %v2313
    %2447 = vmatpush2.bf16.msra.mxu0 %v2312
    %2448 = vmatprep.subr.bf16.mxu0 %v2311
    %2449 = vmatpush2.bf16.msra.mxu0 %v2310
    %2450 = vmatprep.subr.bf16.mxu0 %v2309
    %2451 = vmatpush2.bf16.msra.mxu0 %v2308
    %2452 = vmatprep.mubr.bf16.mxu0 %v2021
    %2453 = vmatmul.mubr.bf16.gmra.mxu0 %v2020
    %v2454 = vpop.f32.mrf.mxu0
    %v2455 = vadd.f32 %v2093, %v2454
    %v2456 = vpop.f32.mrf.mxu0
    %v2457 = vadd.f32 %v2097, %v2456
    %v2458 = vpop.f32.mrf.mxu0
    %v2459 = vpop.f32.mrf.mxu0
    %2460 = vdwg.mxu0
    %2461 = vmatprep.subr.bf16.mxu0 %v2339
    %2462 = vmatpush1.bf16.msra.mxu0 %v2338
    %2463 = vmatprep.subr.bf16.mxu0 %v2337
    %2464 = vmatpush1.bf16.msra.mxu0 %v2336
    %2465 = vmatprep.subr.bf16.mxu0 %v2335
    %2466 = vmatpush1.bf16.msra.mxu0 %v2334
    %2467 = vmatprep.subr.bf16.mxu0 %v2333
    %2468 = vmatpush1.bf16.msra.mxu0 %v2332
    %2469 = vmatprep.subr.bf16.mxu0 %v2331
    %2470 = vmatpush1.bf16.msra.mxu0 %v2330
    %2471 = vmatprep.subr.bf16.mxu0 %v2329
    %2472 = vmatpush1.bf16.msra.mxu0 %v2328
    %2473 = vmatprep.subr.bf16.mxu0 %v2327
    %2474 = vmatpush1.bf16.msra.mxu0 %v2326
    %2475 = vmatprep.subr.bf16.mxu0 %v2325
    %2476 = vmatpush1.bf16.msra.mxu0 %v2324
    %2477 = vmatprep.subr.bf16.mxu0 %v2355
    %2478 = vmatpush2.bf16.msra.mxu0 %v2354
    %2479 = vmatprep.subr.bf16.mxu0 %v2353
    %2480 = vmatpush2.bf16.msra.mxu0 %v2352
    %2481 = vmatprep.subr.bf16.mxu0 %v2351
    %2482 = vmatpush2.bf16.msra.mxu0 %v2350
    %2483 = vmatprep.subr.bf16.mxu0 %v2349
    %2484 = vmatpush2.bf16.msra.mxu0 %v2348
    %2485 = vmatprep.subr.bf16.mxu0 %v2347
    %2486 = vmatpush2.bf16.msra.mxu0 %v2346
    %2487 = vmatprep.subr.bf16.mxu0 %v2345
    %2488 = vmatpush2.bf16.msra.mxu0 %v2344
    %2489 = vmatprep.subr.bf16.mxu0 %v2343
    %2490 = vmatpush2.bf16.msra.mxu0 %v2342
    %2491 = vmatprep.subr.bf16.mxu0 %v2341
    %2492 = vmatpush2.bf16.msra.mxu0 %v2340
    %2493 = vmatprep.mubr.bf16.mxu0 %v2023
    %2494 = vmatmul.mubr.bf16.gmra.mxu0 %v2022
    %v2495 = vpop.f32.mrf.mxu0
    %v2496 = vadd.f32 %v2455, %v2495
    %v2497 = vpop.f32.mrf.mxu0
    %v2498 = vadd.f32 %v2457, %v2497
    %v2499 = vpop.f32.mrf.mxu0
    %v2500 = vpop.f32.mrf.mxu0
    %2501 = vdwg.mxu0
    %v2502 = vmax.f32 %v2496, 0.0
    %v2503 = vmax.f32 %v2498, 0.0
    %v2504 = vpack.c.bf16 %v2502, %v2502
    %v2505 = vpack.c.bf16 %v2503, %v2503
    %v2506 = vld [vmem:[%s5] sm:$0xf]
    %v2507 = vld [vmem:[%s5 + $0x4] sm:$0xf]
    %v2508 = vld [vmem:[%s5 + $0x8] sm:$0xf]
    %v2509 = vld [vmem:[%s5 + $0xc] sm:$0xf]
    %v2510 = vld [vmem:[%s5 + $0x10] sm:$0xf]
    %v2511 = vld [vmem:[%s5 + $0x14] sm:$0xf]
    %v2512 = vld [vmem:[%s5 + $0x18] sm:$0xf]
    %v2513 = vld [vmem:[%s5 + $0x1c] sm:$0xf]
    %v2514 = vld [vmem:[%s5 + $0x20] sm:$0xf]
    %v2515 = vld [vmem:[%s5 + $0x24] sm:$0xf]
    %v2516 = vld [vmem:[%s5 + $0x28] sm:$0xf]
    %v2517 = vld [vmem:[%s5 + $0x2c] sm:$0xf]
    %v2518 = vld [vmem:[%s5 + $0x30] sm:$0xf]
    %v2519 = vld [vmem:[%s5 + $0x34] sm:$0xf]
    %v2520 = vld [vmem:[%s5 + $0x38] sm:$0xf]
    %v2521 = vld [vmem:[%s5 + $0x3c] sm:$0xf]
    %v2522 = vld [vmem:[%s5 + $0x40] sm:$0xf]
    %v2523 = vld [vmem:[%s5 + $0x44] sm:$0xf]
    %v2524 = vld [vmem:[%s5 + $0x48] sm:$0xf]
    %v2525 = vld [vmem:[%s5 + $0x4c] sm:$0xf]
    %v2526 = vld [vmem:[%s5 + $0x50] sm:$0xf]
    %v2527 = vld [vmem:[%s5 + $0x54] sm:$0xf]
    %v2528 = vld [vmem:[%s5 + $0x58] sm:$0xf]
    %v2529 = vld [vmem:[%s5 + $0x5c] sm:$0xf]
    %v2530 = vld [vmem:[%s5 + $0x60] sm:$0xf]
    %v2531 = vld [vmem:[%s5 + $0x64] sm:$0xf]
    %v2532 = vld [vmem:[%s5 + $0x68] sm:$0xf]
    %v2533 = vld [vmem:[%s5 + $0x6c] sm:$0xf]
    %v2534 = vld [vmem:[%s5 + $0x70] sm:$0xf]
    %v2535 = vld [vmem:[%s5 + $0x74] sm:$0xf]
    %v2536 = vld [vmem:[%s5 + $0x78] sm:$0xf]
    %v2537 = vld [vmem:[%s5 + $0x7c] sm:$0xf]
    %v2538 = vld [vmem:[%s6] sm:$0x1]
    %v2540 = vlaneseq
    %v2541 = vshrl.u32 %v2540, 7
    %v2542 = vsub.s32 0, %v2541
    %v2543 = vrot.slane %v2538, %v2542
    %v2577 = vunpack.c.l.b16 %v2506
    %v2578 = vunpack.c.l.b16 %v2507
    %v2579 = vunpack.c.l.b16 %v2508
    %v2580 = vunpack.c.l.b16 %v2509
    %v2581 = vunpack.c.l.b16 %v2510
    %v2582 = vunpack.c.l.b16 %v2511
    %v2583 = vunpack.c.l.b16 %v2512
    %v2584 = vunpack.c.l.b16 %v2513
    %v2585 = vunpack.c.l.b16 %v2514
    %v2586 = vunpack.c.l.b16 %v2515
    %v2587 = vunpack.c.l.b16 %v2516
    %v2588 = vunpack.c.l.b16 %v2517
    %v2589 = vunpack.c.l.b16 %v2518
    %v2590 = vunpack.c.l.b16 %v2519
    %v2591 = vunpack.c.l.b16 %v2520
    %v2592 = vunpack.c.l.b16 %v2521
    %v2593 = vunpack.c.l.b16 %v2522
    %v2594 = vunpack.c.l.b16 %v2523
    %v2595 = vunpack.c.l.b16 %v2524
    %v2596 = vunpack.c.l.b16 %v2525
    %v2597 = vunpack.c.l.b16 %v2526
    %v2598 = vunpack.c.l.b16 %v2527
    %v2599 = vunpack.c.l.b16 %v2528
    %v2600 = vunpack.c.l.b16 %v2529
    %v2601 = vunpack.c.l.b16 %v2530
    %v2602 = vunpack.c.l.b16 %v2531
    %v2603 = vunpack.c.l.b16 %v2532
    %v2604 = vunpack.c.l.b16 %v2533
    %v2605 = vunpack.c.l.b16 %v2534
    %v2606 = vunpack.c.l.b16 %v2535
    %v2607 = vunpack.c.l.b16 %v2536
    %v2608 = vunpack.c.l.b16 %v2537
    %v2609 = vpack.c.b16 %v2578, %v2577
    %v2610 = vpack.c.b16 %v2580, %v2579
    %v2611 = vpack.c.b16 %v2582, %v2581
    %v2612 = vpack.c.b16 %v2584, %v2583
    %v2613 = vpack.c.b16 %v2586, %v2585
    %v2614 = vpack.c.b16 %v2588, %v2587
    %v2615 = vpack.c.b16 %v2590, %v2589
    %v2616 = vpack.c.b16 %v2592, %v2591
    %v2617 = vpack.c.b16 %v2594, %v2593
    %v2618 = vpack.c.b16 %v2596, %v2595
    %v2619 = vpack.c.b16 %v2598, %v2597
    %v2620 = vpack.c.b16 %v2600, %v2599
    %v2621 = vpack.c.b16 %v2602, %v2601
    %v2622 = vpack.c.b16 %v2604, %v2603
    %v2623 = vpack.c.b16 %v2606, %v2605
    %v2624 = vpack.c.b16 %v2608, %v2607
    %2641 = vmatprep.subr.bf16.mxu0 0
    %2642 = vmatpush1.bf16.msra.mxu0 %v2616
    %2643 = vmatprep.subr.bf16.mxu0 0
    %2644 = vmatpush1.bf16.msra.mxu0 %v2615
    %2645 = vmatprep.subr.bf16.mxu0 0
    %2646 = vmatpush1.bf16.msra.mxu0 %v2614
    %2647 = vmatprep.subr.bf16.mxu0 0
    %2648 = vmatpush1.bf16.msra.mxu0 %v2613
    %2649 = vmatprep.subr.bf16.mxu0 0
    %2650 = vmatpush1.bf16.msra.mxu0 %v2612
    %2651 = vmatprep.subr.bf16.mxu0 0
    %2652 = vmatpush1.bf16.msra.mxu0 %v2611
    %2653 = vmatprep.subr.bf16.mxu0 0
    %2654 = vmatpush1.bf16.msra.mxu0 %v2610
    %2655 = vmatprep.subr.bf16.mxu0 0
    %2656 = vmatpush1.bf16.msra.mxu0 %v2609
    %2657 = vmatprep.subr.bf16.mxu0 0
    %2658 = vmatpush2.bf16.msra.mxu0 %v2624
    %2659 = vmatprep.subr.bf16.mxu0 0
    %2660 = vmatpush2.bf16.msra.mxu0 %v2623
    %2661 = vmatprep.subr.bf16.mxu0 0
    %2662 = vmatpush2.bf16.msra.mxu0 %v2622
    %2663 = vmatprep.subr.bf16.mxu0 0
    %2664 = vmatpush2.bf16.msra.mxu0 %v2621
    %2665 = vmatprep.subr.bf16.mxu0 0
    %2666 = vmatpush2.bf16.msra.mxu0 %v2620
    %2667 = vmatprep.subr.bf16.mxu0 0
    %2668 = vmatpush2.bf16.msra.mxu0 %v2619
    %2669 = vmatprep.subr.bf16.mxu0 0
    %2670 = vmatpush2.bf16.msra.mxu0 %v2618
    %2671 = vmatprep.subr.bf16.mxu0 0
    %2672 = vmatpush2.bf16.msra.mxu0 %v2617
    %2673 = vmatprep.mubr.bf16.mxu0 %v2505
    %2674 = vmatmul.mubr.bf16.gmra.mxu0 %v2504
    %v2675 = vpop.f32.mrf.mxu0
    %v2676 = vadd.f32 %v2543, %v2675
    %v2677 = vpop.f32.mrf.mxu0
    %v2678 = vpop.f32.mrf.mxu0
    %v2679 = vpop.f32.mrf.mxu0
    %2680 = vdwg.mxu0
    %vm2681 = vcmask 254976
    %v2682 = vsel %vm2681, %v2676, 0.0
    %2683 = vadd.xlane.f32.xlu0 %v2682
    %v2684 = vpop.xlane.xlu0 %2683
    %v2685 = vrcp.pop 32.0
    %v2686 = vmul.f32 %v2684, %v2685
    %v2687 = vsub.f32 %v2676, %v2686
    %v2688 = vmul.f32 %v2687, %v2687
    %v2689 = vsel %vm2681, %v2688, 0.0
    %2690 = vadd.xlane.f32.xlu0 %v2689
    %v2691 = vpop.xlane.xlu0 %2690
    %v2692 = vmul.f32 %v2691, %v2685
    %v2693 = vadd.f32 %v2692, 1e-05
    %v2694 = vrsqrt.pop %v2693
    %v2695 = vmul.f32 %v2687, %v2694
    %v2696 = vld [vmem:[%s7] sm:$0x1]
    %v2698 = vlaneseq
    %v2699 = vshrl.u32 %v2698, 7
    %v2700 = vsub.s32 0, %v2699
    %v2701 = vrot.slane %v2696, %v2700
    %v2703 = vmul.f32 %v2695, %v2701
    %v2704 = vld [vmem:[%s8] sm:$0x1]
    %v2706 = vlaneseq
    %v2707 = vshrl.u32 %v2706, 7
    %v2708 = vsub.s32 0, %v2707
    %v2709 = vrot.slane %v2704, %v2708
    %v2711 = vadd.f32 %v2703, %v2709
    %v2712 = vpack.c.bf16 %v2711, %v2711
    %v2713 = vld [vmem:[%s9] sm:$0xf]
    %v2714 = vld [vmem:[%s9 + $0x4] sm:$0xf]
    %v2715 = vld [vmem:[%s9 + $0x8] sm:$0xf]
    %v2716 = vld [vmem:[%s9 + $0xc] sm:$0xf]
    %v2717 = vld [vmem:[%s10] sm:$0x1]
    %v2719 = vlaneseq
    %v2720 = vshrl.u32 %v2719, 7
    %v2721 = vsub.s32 0, %v2720
    %v2722 = vrot.slane %v2717, %v2721
    %v2728 = vunpack.c.l.b16 %v2713
    %v2729 = vunpack.c.l.b16 %v2714
    %v2730 = vunpack.c.l.b16 %v2715
    %v2731 = vunpack.c.l.b16 %v2716
    %v2732 = vpack.c.b16 %v2729, %v2728
    %v2733 = vpack.c.b16 %v2731, %v2730
    %vm2736 = vcmask 261120
    %v2738 = vsel %vm2736, %v2712, 0
    %2740 = vmatprep.subr.bf16.mxu0 0
    %2741 = vmatpush1.bf16.msra.mxu0 0
    %2742 = vmatprep.subr.bf16.mxu0 0
    %2743 = vmatpush1.bf16.msra.mxu0 0
    %2744 = vmatprep.subr.bf16.mxu0 0
    %2745 = vmatpush1.bf16.msra.mxu0 0
    %2746 = vmatprep.subr.bf16.mxu0 0
    %2747 = vmatpush1.bf16.msra.mxu0 0
    %2748 = vmatprep.subr.bf16.mxu0 0
    %2749 = vmatpush1.bf16.msra.mxu0 0
    %2750 = vmatprep.subr.bf16.mxu0 0
    %2751 = vmatpush1.bf16.msra.mxu0 0
    %2752 = vmatprep.subr.bf16.mxu0 0
    %2753 = vmatpush1.bf16.msra.mxu0 %v2733
    %2754 = vmatprep.subr.bf16.mxu0 0
    %2755 = vmatpush1.bf16.msra.mxu0 %v2732
    %2756 = vmatprep.subr.bf16.mxu0 0
    %2757 = vmatpush2.bf16.msra.mxu0 0
    %2758 = vmatprep.subr.bf16.mxu0 0
    %2759 = vmatpush2.bf16.msra.mxu0 0
    %2760 = vmatprep.subr.bf16.mxu0 0
    %2761 = vmatpush2.bf16.msra.mxu0 0
    %2762 = vmatprep.subr.bf16.mxu0 0
    %2763 = vmatpush2.bf16.msra.mxu0 0
    %2764 = vmatprep.subr.bf16.mxu0 0
    %2765 = vmatpush2.bf16.msra.mxu0 0
    %2766 = vmatprep.subr.bf16.mxu0 0
    %2767 = vmatpush2.bf16.msra.mxu0 0
    %2768 = vmatprep.subr.bf16.mxu0 0
    %2769 = vmatpush2.bf16.msra.mxu0 0
    %2770 = vmatprep.subr.bf16.mxu0 0
    %2771 = vmatpush2.bf16.msra.mxu0 0
    %2772 = vmatprep.mubr.bf16.mxu0 0
    %2773 = vmatmul.mubr.bf16.gmra.mxu0 %v2738
    %v2774 = vpop.f32.mrf.mxu0
    %v2775 = vadd.f32 %v2722, %v2774
    %v2776 = vpop.f32.mrf.mxu0
    %v2777 = vpop.f32.mrf.mxu0
    %v2778 = vpop.f32.mrf.mxu0
    %2779 = vdwg.mxu0
    %v2780 = vmax.f32 %v2775, 0.0
    %v2781 = vpack.c.bf16 %v2780, %v2780
    %v2782 = vld [vmem:[%s11] sm:$0xf]
    %v2783 = vld [vmem:[%s11 + $0x4] sm:$0xf]
    %v2784 = vld [vmem:[%s11 + $0x8] sm:$0xf]
    %v2785 = vld [vmem:[%s11 + $0xc] sm:$0xf]
    %v2786 = vld [vmem:[%s12] sm:$0x1]
    %v2788 = vlaneseq
    %v2789 = vshrl.u32 %v2788, 7
    %v2790 = vsub.s32 0, %v2789
    %v2791 = vrot.slane %v2786, %v2790
    %v2797 = vunpack.c.l.b16 %v2782
    %v2798 = vunpack.c.l.b16 %v2783
    %v2799 = vunpack.c.l.b16 %v2784
    %v2800 = vunpack.c.l.b16 %v2785
    %v2801 = vpack.c.b16 %v2798, %v2797
    %v2802 = vpack.c.b16 %v2800, %v2799
    %v2806 = vsel %vm2736, %v2781, 0
    %2808 = vmatprep.subr.bf16.mxu0 0
    %2809 = vmatpush1.bf16.msra.mxu0 0
    %2810 = vmatprep.subr.bf16.mxu0 0
    %2811 = vmatpush1.bf16.msra.mxu0 0
    %2812 = vmatprep.subr.bf16.mxu0 0
    %2813 = vmatpush1.bf16.msra.mxu0 0
    %2814 = vmatprep.subr.bf16.mxu0 0
    %2815 = vmatpush1.bf16.msra.mxu0 0
    %2816 = vmatprep.subr.bf16.mxu0 0
    %2817 = vmatpush1.bf16.msra.mxu0 0
    %2818 = vmatprep.subr.bf16.mxu0 0
    %2819 = vmatpush1.bf16.msra.mxu0 0
    %2820 = vmatprep.subr.bf16.mxu0 0
    %2821 = vmatpush1.bf16.msra.mxu0 %v2802
    %2822 = vmatprep.subr.bf16.mxu0 0
    %2823 = vmatpush1.bf16.msra.mxu0 %v2801
    %2824 = vmatprep.subr.bf16.mxu0 0
    %2825 = vmatpush2.bf16.msra.mxu0 0
    %2826 = vmatprep.subr.bf16.mxu0 0
    %2827 = vmatpush2.bf16.msra.mxu0 0
    %2828 = vmatprep.subr.bf16.mxu0 0
    %2829 = vmatpush2.bf16.msra.mxu0 0
    %2830 = vmatprep.subr.bf16.mxu0 0
    %2831 = vmatpush2.bf16.msra.mxu0 0
    %2832 = vmatprep.subr.bf16.mxu0 0
    %2833 = vmatpush2.bf16.msra.mxu0 0
    %2834 = vmatprep.subr.bf16.mxu0 0
    %2835 = vmatpush2.bf16.msra.mxu0 0
    %2836 = vmatprep.subr.bf16.mxu0 0
    %2837 = vmatpush2.bf16.msra.mxu0 0
    %2838 = vmatprep.subr.bf16.mxu0 0
    %2839 = vmatpush2.bf16.msra.mxu0 0
    %2840 = vmatprep.mubr.bf16.mxu0 0
    %2841 = vmatmul.mubr.bf16.gmra.mxu0 %v2806
    %v2842 = vpop.f32.mrf.mxu0
    %v2843 = vadd.f32 %v2791, %v2842
    %v2844 = vpop.f32.mrf.mxu0
    %v2845 = vpop.f32.mrf.mxu0
    %v2846 = vpop.f32.mrf.mxu0
    %2847 = vdwg.mxu0
    %v2848 = vmax.f32 %v2843, 0.0
    %v2849 = vpack.c.bf16 %v2848, %v2848
    %v2850 = vld [vmem:[%s13] sm:$0xf]
    %v2851 = vld [vmem:[%s13 + $0x4] sm:$0xf]
    %v2852 = vld [vmem:[%s13 + $0x8] sm:$0xf]
    %v2853 = vld [vmem:[%s13 + $0xc] sm:$0xf]
    %v2854 = vld [vmem:[%s14] sm:$0x1]
    %v2856 = vlaneseq
    %v2857 = vshrl.u32 %v2856, 7
    %v2858 = vsub.s32 0, %v2857
    %v2859 = vrot.slane %v2854, %v2858
    %v2865 = vunpack.c.l.b16 %v2850
    %v2866 = vunpack.c.l.b16 %v2851
    %v2867 = vunpack.c.l.b16 %v2852
    %v2868 = vunpack.c.l.b16 %v2853
    %v2869 = vpack.c.b16 %v2866, %v2865
    %v2870 = vpack.c.b16 %v2868, %v2867
    %v2874 = vsel %vm2736, %v2849, 0
    %2876 = vmatprep.subr.bf16.mxu0 0
    %2877 = vmatpush1.bf16.msra.mxu0 0
    %2878 = vmatprep.subr.bf16.mxu0 0
    %2879 = vmatpush1.bf16.msra.mxu0 0
    %2880 = vmatprep.subr.bf16.mxu0 0
    %2881 = vmatpush1.bf16.msra.mxu0 0
    %2882 = vmatprep.subr.bf16.mxu0 0
    %2883 = vmatpush1.bf16.msra.mxu0 0
    %2884 = vmatprep.subr.bf16.mxu0 0
    %2885 = vmatpush1.bf16.msra.mxu0 0
    %2886 = vmatprep.subr.bf16.mxu0 0
    %2887 = vmatpush1.bf16.msra.mxu0 0
    %2888 = vmatprep.subr.bf16.mxu0 0
    %2889 = vmatpush1.bf16.msra.mxu0 %v2870
    %2890 = vmatprep.subr.bf16.mxu0 0
    %2891 = vmatpush1.bf16.msra.mxu0 %v2869
    %2892 = vmatprep.subr.bf16.mxu0 0
    %2893 = vmatpush2.bf16.msra.mxu0 0
    %2894 = vmatprep.subr.bf16.mxu0 0
    %2895 = vmatpush2.bf16.msra.mxu0 0
    %2896 = vmatprep.subr.bf16.mxu0 0
    %2897 = vmatpush2.bf16.msra.mxu0 0
    %2898 = vmatprep.subr.bf16.mxu0 0
    %2899 = vmatpush2.bf16.msra.mxu0 0
    %2900 = vmatprep.subr.bf16.mxu0 0
    %2901 = vmatpush2.bf16.msra.mxu0 0
    %2902 = vmatprep.subr.bf16.mxu0 0
    %2903 = vmatpush2.bf16.msra.mxu0 0
    %2904 = vmatprep.subr.bf16.mxu0 0
    %2905 = vmatpush2.bf16.msra.mxu0 0
    %2906 = vmatprep.subr.bf16.mxu0 0
    %2907 = vmatpush2.bf16.msra.mxu0 0
    %2908 = vmatprep.mubr.bf16.mxu0 0
    %2909 = vmatmul.mubr.bf16.gmra.mxu0 %v2874
    %v2910 = vpop.f32.mrf.mxu0
    %v2911 = vadd.f32 %v2859, %v2910
    %v2912 = vpop.f32.mrf.mxu0
    %v2913 = vpop.f32.mrf.mxu0
    %v2914 = vpop.f32.mrf.mxu0
    %2915 = vdwg.mxu0
    %v2916 = vtanh.pop %v2911
    %v2917 = vadd.f32 %v2916, 1.0
    %v2918 = vmul.f32 %v2917, 6.0
    %v2919 = vadd.f32 %v2918, -10.0
    %v2920 = vmul.f32 %v2919, 1.442695
    %v2921 = vpow.pop %v2920
    %v2922 = vld [vmem:[%s15] sm:$0x3]
    %2924 = vrot.lane.b32.xlu0 %v2921, 125
    %v2925 = vpop.permute.xlu0 %2924
    %v2927 = vmul.f32 %v2922, %v2925
    %v2928 = vadd.f32 %v2911, %v2927
    %v2929 = vmul.f32 %v2922, -0.5
    %v2930 = vmul.f32 %v2929, %v2922
    %2932 = vrot.lane.b32.xlu0 %v2919, 125
    %v2933 = vpop.permute.xlu0 %2932
    %v2935 = vsub.f32 %v2930, %v2933
    %vm2936 = vcmask 17408
    %v2937 = vsel %vm2936, %v2935, 0.0
    %2938 = vadd.xlane.f32.xlu0 %v2937
    %v2939 = vpop.xlane.xlu0 %2938
    %v2940 = vsub.f32 %v2939, 2.7568157
    %v2941 = vtanh.pop %v2928
    %v2942 = vmul.f32 %v2941, %v2941
    %v2943 = vsub.f32 1.0, %v2942
    %v2944 = vmax.f32 %v2943, 0.0
    %v2945 = vadd.f32 %v2944, 1e-06
    %v2946 = vlog2.pop %v2945
    %v2947 = vmul.f32 %v2946, 0.6931472
    %v2948 = vsel %vm2936, %v2947, 0.0
    %2949 = vadd.xlane.f32.xlu0 %v2948
    %v2950 = vpop.xlane.xlu0 %2949
    %v2951 = vsub.f32 %v2940, %v2950
    %2953 = vrot.lane.b32.xlu0 %v2941, 3
    %v2954 = vpop.permute.xlu0 %2953
    %2956 = vrot.lane.b32.xlu0 %v2919, 4
    %v2957 = vpop.permute.xlu0 %2956
    %vm2959 = vcmask 23552
    %v2960 = vsel %vm2959, %v2916, %v2954
    %vm2961 = vcmask 48128
    %v2962 = vsel %vm2961, %v2960, %v2951
    %vm2963 = vcmask 56320
    %v2964 = vsel %vm2963, %v2962, %v2957
    %vm2965 = vcmask 80896
    %v2966 = vsel %vm2965, %v2964, 0.0
    %2967 = vst [vmem:[%s16] sm:$0x3] %v2966
    // Predicated region
    $region74: #{actor_forward.1} parent=1 // pred_check
      _
    $region75: #{actor_forward.1} parent=1 // pred_check_branch
      %2969 = sbr.rel (0) target = $region77
    $region76: #{actor_forward.1} parent=1 // pred_region
      _
    $region77: #{actor_forward.1} parent=1 // pred_fallthru
      _
    // Predicated region
    $region78: #{actor_forward.1} parent=1 // pred_check
      _
    $region79: #{actor_forward.1} parent=1 // pred_check_branch
      %2971 = sbr.rel (0) target = $region81
    $region80: #{actor_forward.1} parent=1 // pred_region
      _
    $region81: #{actor_forward.1} parent=1 // pred_fallthru
      _
    %2972 = vsyncpa [#allocation3], 1
    %2973 = vsyncpa [#allocation5], 1

</llo_original>
